<compile_context>
chip_gen: v7x
topology: tpu7x:2x2x1
jax: 0.10.0
libtpu: 0.0.40
codegen_flags: <defaults>
</compile_context>

<pallas_src>
import functools

import jax
import jax.numpy as jnp
from jax.experimental import pallas as pl
from jax.experimental.pallas import tpu as pltpu

IN_CH = 5                 # xyz + [is_chair, is_pose] flags
IN_CH_PAD = 8             # channel dim padded to 8 (sublane-friendly MXU K)
H1, H2 = 64, 128          # pointwise MLP widths
ENC_SZ = 256              # reshape_sz in PoseProxy


def _lrelu(x):
    # leaky_relu(negative_slope=0.01) == max(x, 0.01*x): 2 VPU ops, no select.
    return jnp.maximum(x, 0.01 * x)


def _round_up(x, m):
    return (x + m - 1) // m * m


def pose_proxy_kernel(pts_ref, w1_ref, b1_ref, w2_ref, b2_ref, w3_ref, b3_ref,
                      out_ref):
    """grid = (B, N_tiles); channels-major activations (C, TN).

    out_ref (block (1, 256, 1), index constant along the tile axis) is the
    running-max accumulator: it stays resident in VMEM across tiles and is
    written back to HBM once per batch element.
    """
    t = pl.program_id(1)

    @pl.when(t == 0)
    def _():
        out_ref[...] = jnp.full(out_ref.shape, -jnp.inf, dtype=out_ref.dtype)

    x = pts_ref[0]                                              # (8, TN) bf16

    # ---- layer 1 (8 -> 64): tiny K=8 MXU dot, f32 accumulation ----
    h = jnp.dot(w1_ref[...], x, preferred_element_type=jnp.float32)
    h = _lrelu(h + b1_ref[...])                                 # (64, TN) f32

    # ---- layers 2/3 channels-major on the MXU (bf16 operands, f32 accum);
    #      the RHS free dimension is TN, so the 256x256 MXUs stay well fed ----
    h = jnp.dot(w2_ref[...], h.astype(jnp.bfloat16),
                preferred_element_type=jnp.float32)
    h = _lrelu(h + b2_ref[...])                                 # (128, TN) f32
    h = jnp.dot(w3_ref[...], h.astype(jnp.bfloat16),
                preferred_element_type=jnp.float32)
    h = _lrelu(h + b3_ref[...])                                 # (256, TN) f32

    # ---- max-pool over the point dim: lane reduce (XLU), f32 running max ----
    tile_max = jnp.max(h, axis=1, keepdims=True)                # (256, 1)
    out_ref[0] = jnp.maximum(out_ref[0], tile_max)


def make_params(key, scale=0.2):
    ks = jax.random.split(key, 8)

    def w(k, shape):
        return jax.random.normal(k, shape, jnp.float32) * scale

    return dict(
        w1=w(ks[0], (IN_CH, H1)),      b1=w(ks[1], (1, H1)),
        w2=w(ks[2], (H1, H2)),         b2=w(ks[3], (1, H2)),
        w3=w(ks[4], (H2, ENC_SZ)),     b3=w(ks[5], (1, ENC_SZ)),
        w_head=w(ks[6], (ENC_SZ, 1)),  b_head=w(ks[7], (1, 1)),
    )


def _augment_and_concat(chairs, pose):
    """Reference-path augmentation: (B,Nc,3)+[1,0], (B,Np,3)+[0,1] -> (B,N,5)."""
    B, Nc, _ = chairs.shape
    _, Np, _ = pose.shape
    chairs5 = jnp.concatenate(
        [chairs, jnp.ones((B, Nc, 1), chairs.dtype), jnp.zeros((B, Nc, 1), chairs.dtype)],
        axis=-1)
    pose5 = jnp.concatenate(
        [pose, jnp.zeros((B, Np, 1), pose.dtype), jnp.ones((B, Np, 1), pose.dtype)],
        axis=-1)
    return jnp.concatenate([chairs5, pose5], axis=1)          # (B, N, 5)


def _channels_major_pts(chairs, pose):
    """Build the kernel input: (B, 8, N) bf16, channels-major.

    Rows 0-2: xyz, row 3: is_chair flag, row 4: is_pose flag, rows 5-7: zero
    padding (so layer 1 is a single K=8 MXU dot).  bf16 storage halves the
    per-tile DMA; the matmul operands are bf16 anyway.
    """
    B, Nc, _ = chairs.shape
    _, Np, _ = pose.shape
    N = Nc + Np
    coords = jnp.swapaxes(jnp.concatenate([chairs, pose], axis=1), 1, 2)  # (B,3,N)
    ch = jnp.concatenate([jnp.ones((B, 1, Nc), coords.dtype),
                          jnp.zeros((B, 1, Np), coords.dtype)], axis=2)
    po = 1.0 - ch
    zpad = jnp.zeros((B, IN_CH_PAD - IN_CH, N), coords.dtype)
    return jnp.concatenate([coords, ch, po, zpad], axis=1).astype(jnp.bfloat16)


@functools.partial(jax.jit, static_argnames=("tile_n",))
def pose_proxy_forward(chairs, pose, params, tile_n=4096):
    """chairs: (B, Nc, 3), pose: (B, Np, 3) f32 point clouds (is_pcd=True path)."""
    B = chairs.shape[0]
    pts = _channels_major_pts(chairs, pose)                    # (B, 8, N) bf16
    N = pts.shape[2]

    # Load-balanced point tiles: nt = ceil(N / tile_n), tn = ceil(N / nt)
    # rounded up to a lane multiple (128).  Pad the point axis by repeating the
    # last point -- duplicates cannot change the max-pool, so no masking needed.
    nt = max(1, -(-N // tile_n))
    tn = _round_up(-(-N // nt), 128)
    n_pad = tn * nt
    if n_pad > N:
        pts = jnp.pad(pts, ((0, 0), (0, 0), (0, n_pad - N)), mode="edge")

    # Channels-major ("transposed") weights: bf16 operands for the MXU layers;
    # biases stay f32 as (C, 1) columns.  Layer-1 K is zero-padded 5 -> 8.
    w1t = jnp.pad(params["w1"].T, ((0, 0), (0, IN_CH_PAD - IN_CH))).astype(jnp.bfloat16)
    b1c = params["b1"].reshape(H1, 1)
    w2t = params["w2"].T.astype(jnp.bfloat16)                  # (128, 64)
    b2c = params["b2"].reshape(H2, 1)
    w3t = params["w3"].T.astype(jnp.bfloat16)                  # (256, 128)
    b3c = params["b3"].reshape(ENC_SZ, 1)
    weight_args = [w1t, b1c, w2t, b2c, w3t, b3c]

    def const_spec(arr):
        nd = arr.ndim
        return pl.BlockSpec(arr.shape, lambda b, t, _nd=nd: (0,) * _nd)

    feat = pl.pallas_call(
        pose_proxy_kernel,
        out_shape=jax.ShapeDtypeStruct((B, ENC_SZ, 1), jnp.float32),
        grid_spec=pltpu.PrefetchScalarGridSpec(
            num_scalar_prefetch=0,
            grid=(B, nt),
            in_specs=[pl.BlockSpec((1, IN_CH_PAD, tn), lambda b, t: (b, 0, t))]
                     + [const_spec(a) for a in weight_args],
            out_specs=pl.BlockSpec((1, ENC_SZ, 1), lambda b, t: (b, 0, 0)),
        ),
        compiler_params=pltpu.CompilerParams(
            dimension_semantics=("parallel", "arbitrary"),
            # ~12-16 MiB working set at tn=4096; 32 MiB also covers v5e's
            # smaller default scope and is <= physical VMEM on every chip.
            vmem_limit_bytes=32 * 1024 * 1024,
        ),
    )(pts, *weight_args)

    # Linear(256, 1) head + nn.Flatten(0) + .flatten() in the wrapper: one
    # well-shaped batched matmul instead of a per-tile 1/256-column matvec.
    g = feat.reshape(B, ENC_SZ)
    y = g @ params["w_head"] + params["b_head"]                # (B, 1) f32
    return y.reshape(-1)


def reference_forward(chairs, pose, params):
    """Plain-JAX reference of the same math (bf16 matmul operands, f32 accum)."""
    pts = _augment_and_concat(chairs, pose).astype(jnp.bfloat16)   # (B, N, 5)
    h = _lrelu(jnp.dot(pts, params["w1"].astype(jnp.bfloat16),
                       preferred_element_type=jnp.float32) + params["b1"])
    h = _lrelu(jnp.dot(h.astype(jnp.bfloat16), params["w2"].astype(jnp.bfloat16),
                       preferred_element_type=jnp.float32) + params["b2"])
    h = _lrelu(jnp.dot(h.astype(jnp.bfloat16), params["w3"].astype(jnp.bfloat16),
                       preferred_element_type=jnp.float32) + params["b3"])
    g = jnp.max(h, axis=1)                                         # (B, 256) f32
    y = g @ params["w_head"] + params["b_head"]
    return y.reshape(-1)


# TODO(synk): is_pcd=False path (get_vf + sample_mesh_surface) needs mesh data
# structures and host-side np.random.choice; no clean Pallas equivalent.

if __name__ == "__main__":
    key = jax.random.PRNGKey(0)
    k_chair, k_pose, k_param = jax.random.split(key, 3)

    B, Nc, Np = 2, 128, 24      # small clouds (real model samples 10000 pts/mesh)
    chairs = jax.random.normal(k_chair, (B, Nc, 3), jnp.float32)
    pose = jax.random.normal(k_pose, (B, Np, 3), jnp.float32)
    params = make_params(k_param)

    ref = reference_forward(chairs, pose, params)

    # Single-tile path (tile >= N).
    out = pose_proxy_forward(chairs, pose, params)
    jax.block_until_ready(out)
    assert out.shape == (B,)
    assert jnp.allclose(out, ref, atol=5e-2, rtol=5e-2), (out, ref)

    # Multi-tile path (exercises the resident running-max output block and the
    # duplicate-last-point padding): N=152 -> 3 tiles of 128.
    out_tiled = pose_proxy_forward(chairs, pose, params, tile_n=64)
    jax.block_until_ready(out_tiled)
    assert jnp.allclose(out_tiled, ref, atol=5e-2, rtol=5e-2), (out_tiled, ref)

    print("KERNEL_OK")
</pallas_src>

<mosaic_0001>
module attributes {stable_mosaic.version = 11 : i64} {
  func.func @pose_proxy_kernel(%arg0: i32, %arg1: i32, %arg2: memref<1x8x256xbf16, #tpu.memory_space<vmem>>, %arg3: memref<64x8xbf16, #tpu.memory_space<vmem>>, %arg4: memref<64x1xf32, #tpu.memory_space<vmem>>, %arg5: memref<128x64xbf16, #tpu.memory_space<vmem>>, %arg6: memref<128x1xf32, #tpu.memory_space<vmem>>, %arg7: memref<256x128xbf16, #tpu.memory_space<vmem>>, %arg8: memref<256x1xf32, #tpu.memory_space<vmem>>, %arg9: memref<1x256x1xf32, #tpu.memory_space<vmem>>) attributes {dimension_semantics = [#tpu.dimension_semantics<parallel>, #tpu.dimension_semantics<arbitrary>], iteration_bounds = array<i64: 2, 1>, scalar_prefetch = 0 : i64, scratch_operands = 0 : i64, tpu.core_type = #tpu.core_type<tc>, window_params = [{transform_indices = @transform_0, window_bounds = array<i64: 1, 8, 256>}, {pipeline_mode = #tpu.pipeline_mode<synchronous>, transform_indices = @transform_1, window_bounds = array<i64: 64, 8>}, {pipeline_mode = #tpu.pipeline_mode<synchronous>, transform_indices = @transform_2, window_bounds = array<i64: 64, 1>}, {pipeline_mode = #tpu.pipeline_mode<synchronous>, transform_indices = @transform_3, window_bounds = array<i64: 128, 64>}, {pipeline_mode = #tpu.pipeline_mode<synchronous>, transform_indices = @transform_4, window_bounds = array<i64: 128, 1>}, {pipeline_mode = #tpu.pipeline_mode<synchronous>, transform_indices = @transform_5, window_bounds = array<i64: 256, 128>}, {pipeline_mode = #tpu.pipeline_mode<synchronous>, transform_indices = @transform_6, window_bounds = array<i64: 256, 1>}, {transform_indices = @transform_7, window_bounds = array<i64: 1, 256, 1>}]} {
    %c0_i32 = arith.constant 0 : i32
    %0 = arith.cmpi eq, %arg1, %c0_i32 : i32
    %1 = arith.extui %0 : i1 to i32
    %c0_i32_0 = arith.constant 0 : i32
    %2 = arith.cmpi ne, %1, %c0_i32_0 : i32
    scf.if %2 {
      %cst_27 = arith.constant 0xFF800000 : f32
      %39 = vector.broadcast %cst_27 : f32 to vector<1x256x1xf32>
      %c0_28 = arith.constant 0 : index
      %c0_29 = arith.constant 0 : index
      %c0_30 = arith.constant 0 : index
      %40 = vector.load %arg9[%c0_28, %c0_29, %c0_30] : memref<1x256x1xf32, #tpu.memory_space<vmem>>, vector<1x256x1xf32>
      tpu.vector_store %arg9[%c0_28, %c0_29, %c0_30], %39 {strides = array<i32>} : memref<1x256x1xf32, #tpu.memory_space<vmem>>, vector<1x256x1xf32>,
    } else {
    }
    %c0 = arith.constant 0 : index
    %c0_1 = arith.constant 0 : index
    %c0_2 = arith.constant 0 : index
    %3 = vector.load %arg2[%c0, %c0_1, %c0_2] : memref<1x8x256xbf16, #tpu.memory_space<vmem>>, vector<1x8x256xbf16>
    %4 = vector.shape_cast %3 : vector<1x8x256xbf16> to vector<8x256xbf16>
    %c0_3 = arith.constant 0 : index
    %c0_4 = arith.constant 0 : index
    %5 = vector.load %arg3[%c0_3, %c0_4] : memref<64x8xbf16, #tpu.memory_space<vmem>>, vector<64x8xbf16>
    %cst = arith.constant dense<0.000000e+00> : vector<64x256xf32>
    %6 = tpu.matmul %5, %4, %cst {dimension_numbers = #tpu.dot_dimension_numbers<[1], [0], [0], [1], [0, 0, 1, 1], [], []>} : vector<64x8xbf16>, vector<8x256xbf16>, vector<64x256xf32> -> vector<64x256xf32>
    %c0_5 = arith.constant 0 : index
    %c0_6 = arith.constant 0 : index
    %7 = vector.load %arg4[%c0_5, %c0_6] : memref<64x1xf32, #tpu.memory_space<vmem>>, vector<64x1xf32>
    %8 = vector.broadcast %7 : vector<64x1xf32> to vector<64x256xf32>
    %9 = arith.addf %6, %8 : vector<64x256xf32>
    %cst_7 = arith.constant 0.00999999977 : f32
    %10 = vector.broadcast %cst_7 : f32 to vector<64x256xf32>
    %11 = arith.mulf %10, %9 : vector<64x256xf32>
    %12 = arith.maximumf %9, %11 : vector<64x256xf32>
    %c0_8 = arith.constant 0 : index
    %c0_9 = arith.constant 0 : index
    %13 = vector.load %arg5[%c0_8, %c0_9] : memref<128x64xbf16, #tpu.memory_space<vmem>>, vector<128x64xbf16>
    %14 = arith.truncf %12 : vector<64x256xf32> to vector<64x256xbf16>
    %cst_10 = arith.constant dense<0.000000e+00> : vector<128x256xf32>
    %15 = tpu.matmul %13, %14, %cst_10 {dimension_numbers = #tpu.dot_dimension_numbers<[1], [0], [0], [1], [0, 0, 1, 1], [], []>} : vector<128x64xbf16>, vector<64x256xbf16>, vector<128x256xf32> -> vector<128x256xf32>
    %c0_11 = arith.constant 0 : index
    %c0_12 = arith.constant 0 : index
    %16 = vector.load %arg6[%c0_11, %c0_12] : memref<128x1xf32, #tpu.memory_space<vmem>>, vector<128x1xf32>
    %17 = vector.broadcast %16 : vector<128x1xf32> to vector<128x256xf32>
    %18 = arith.addf %15, %17 : vector<128x256xf32>
    %cst_13 = arith.constant 0.00999999977 : f32
    %19 = vector.broadcast %cst_13 : f32 to vector<128x256xf32>
    %20 = arith.mulf %19, %18 : vector<128x256xf32>
    %21 = arith.maximumf %18, %20 : vector<128x256xf32>
    %c0_14 = arith.constant 0 : index
    %c0_15 = arith.constant 0 : index
    %22 = vector.load %arg7[%c0_14, %c0_15] : memref<256x128xbf16, #tpu.memory_space<vmem>>, vector<256x128xbf16>
    %23 = arith.truncf %21 : vector<128x256xf32> to vector<128x256xbf16>
    %cst_16 = arith.constant dense<0.000000e+00> : vector<256x256xf32>
    %24 = tpu.matmul %22, %23, %cst_16 {dimension_numbers = #tpu.dot_dimension_numbers<[1], [0], [0], [1], [0, 0, 1, 1], [], []>} : vector<256x128xbf16>, vector<128x256xbf16>, vector<256x256xf32> -> vector<256x256xf32>
    %c0_17 = arith.constant 0 : index
    %c0_18 = arith.constant 0 : index
    %25 = vector.load %arg8[%c0_17, %c0_18] : memref<256x1xf32, #tpu.memory_space<vmem>>, vector<256x1xf32>
    %26 = vector.broadcast %25 : vector<256x1xf32> to vector<256x256xf32>
    %27 = arith.addf %24, %26 : vector<256x256xf32>
    %cst_19 = arith.constant 0.00999999977 : f32
    %28 = vector.broadcast %cst_19 : f32 to vector<256x256xf32>
    %29 = arith.mulf %28, %27 : vector<256x256xf32>
    %30 = arith.maximumf %27, %29 : vector<256x256xf32>
    %cst_20 = arith.constant dense<0xFF800000> : vector<256xf32>
    %31 = vector.multi_reduction <maximumf>, %30, %cst_20 [1] : vector<256x256xf32> to vector<256xf32>
    %32 = vector.shape_cast %31 : vector<256xf32> to vector<256x1xf32>
    %c0_21 = arith.constant 0 : index
    %c0_22 = arith.constant 0 : index
    %c0_23 = arith.constant 0 : index
    %33 = vector.load %arg9[%c0_21, %c0_22, %c0_23] : memref<1x256x1xf32, #tpu.memory_space<vmem>>, vector<1x256x1xf32>
    %34 = vector.shape_cast %33 : vector<1x256x1xf32> to vector<256x1xf32>
    %35 = arith.maximumf %34, %32 : vector<256x1xf32>
    %c0_24 = arith.constant 0 : index
    %c0_25 = arith.constant 0 : index
    %c0_26 = arith.constant 0 : index
    %36 = vector.load %arg9[%c0_24, %c0_25, %c0_26] : memref<1x256x1xf32, #tpu.memory_space<vmem>>, vector<1x256x1xf32>
    %37 = vector.shape_cast %36 : vector<1x256x1xf32> to vector<256x1xf32>
    %38 = vector.shape_cast %35 : vector<256x1xf32> to vector<1x256x1xf32>
    tpu.vector_store %arg9[%c0_24, %c0_25, %c0_26], %38 {strides = array<i32>} : memref<1x256x1xf32, #tpu.memory_space<vmem>>, vector<1x256x1xf32>,
    return
  }
  func.func @transform_0(%arg0: i32, %arg1: i32) -> (i32, i32, i32) {
    %c0_i32 = arith.constant 0 : i32
    %c0_i32_0 = arith.constant 0 : i32
    return %arg0, %c0_i32, %arg1 : i32, i32, i32
  }
  func.func @transform_1(%arg0: i32, %arg1: i32) -> (i32, i32) {
    %c0_i32 = arith.constant 0 : i32
    %c0_i32_0 = arith.constant 0 : i32
    %c0_i32_1 = arith.constant 0 : i32
    return %c0_i32, %c0_i32_0 : i32, i32
  }
  func.func @transform_2(%arg0: i32, %arg1: i32) -> (i32, i32) {
    %c0_i32 = arith.constant 0 : i32
    %c0_i32_0 = arith.constant 0 : i32
    %c0_i32_1 = arith.constant 0 : i32
    return %c0_i32, %c0_i32_0 : i32, i32
  }
  func.func @transform_3(%arg0: i32, %arg1: i32) -> (i32, i32) {
    %c0_i32 = arith.constant 0 : i32
    %c0_i32_0 = arith.constant 0 : i32
    %c0_i32_1 = arith.constant 0 : i32
    return %c0_i32, %c0_i32_0 : i32, i32
  }
  func.func @transform_4(%arg0: i32, %arg1: i32) -> (i32, i32) {
    %c0_i32 = arith.constant 0 : i32
    %c0_i32_0 = arith.constant 0 : i32
    %c0_i32_1 = arith.constant 0 : i32
    return %c0_i32, %c0_i32_0 : i32, i32
  }
  func.func @transform_5(%arg0: i32, %arg1: i32) -> (i32, i32) {
    %c0_i32 = arith.constant 0 : i32
    %c0_i32_0 = arith.constant 0 : i32
    %c0_i32_1 = arith.constant 0 : i32
    return %c0_i32, %c0_i32_0 : i32, i32
  }
  func.func @transform_6(%arg0: i32, %arg1: i32) -> (i32, i32) {
    %c0_i32 = arith.constant 0 : i32
    %c0_i32_0 = arith.constant 0 : i32
    %c0_i32_1 = arith.constant 0 : i32
    return %c0_i32, %c0_i32_0 : i32, i32
  }
  func.func @transform_7(%arg0: i32, %arg1: i32) -> (i32, i32, i32) {
    %c0_i32 = arith.constant 0 : i32
    %c0_i32_0 = arith.constant 0 : i32
    %c0_i32_1 = arith.constant 0 : i32
    return %arg0, %c0_i32, %c0_i32_0 : i32, i32, i32
  }
}

</mosaic_0001>

<llo_original>
// kernel: pose_proxy_forward.1
$region0: #{pose_proxy_forward.1}
  #allocation0 [shape = 'u32[]', space=smem, size = 0x4, offset = 0x4, fixed_abs, tag = 'smem constant byte address 0x4 - core index']
  #allocation1 [shape = 'u32[144,128]{1,0:T(1,128)}', space=vmem, size = 0x12000, scoped, tag = 'internal scratch']
  %s0 = inlined_call_operand.vmem [shape: bf16[2,8,256], index: 0, kind: input, shape index: {}]
  %s1 = inlined_call_operand.vmem [shape: bf16[64,8], index: 1, kind: input, shape index: {}]
  %s2 = inlined_call_operand.vmem [shape: f32[64,1], index: 2, kind: input, shape index: {}]
  %s3 = inlined_call_operand.vmem [shape: bf16[128,64], index: 3, kind: input, shape index: {}]
  %s4 = inlined_call_operand.vmem [shape: f32[128,1], index: 4, kind: input, shape index: {}]
  %s5 = inlined_call_operand.vmem [shape: bf16[256,128], index: 5, kind: input, shape index: {}]
  %s6 = inlined_call_operand.vmem [shape: f32[256,1], index: 6, kind: input, shape index: {}]
  %s7 = inlined_call_operand.vmem [shape: f32[2,256,1], index: 7, kind: output, shape index: {}]
  %s8 = sld [smem:[#allocation0]]
  $region65: #{pose_proxy_forward.1} parent=0
    _
  %s10 = ssub.s32 1, %s8
  %s11 = scalar_select 0, %s10, %s8
  loop: start=0, step=1, limit=4
  $region2: #{pose_proxy_forward.1} parent=0 // loop_pre_header
    _
  $region3: #{pose_proxy_forward.1} parent=0 // loop_header
    %s13 = sphi 0, %s17
    %p14 = scmp.ge.s32.totalorder %s13, 4
    %s20 = sphi 0, %s32
    %s21 = sphi 0, %s28
    %s22 = sphi 0, %s20
    %s23 = sphi 0, %s21
    %s24 = sphi 0, %s22
    %s25 = sphi 0, %s23
    %s37 = sphi 0, %s39
    %s40 = sphi 0, %s37
    %s41 = sphi 0, %s40
    %s57 = sphi 0, %s41
    %s61 = sphi 0, %s61
    %s63 = sphi 0, %s61
    %s64 = sphi 0, %s63
    %s78 = sphi 0, %s64
    %s82 = sphi 0, %s82
    %s84 = sphi 0, %s82
    %s85 = sphi 0, %s84
    %s99 = sphi 0, %s85
    %s103 = sphi 0, %s103
    %s105 = sphi 0, %s103
    %s106 = sphi 0, %s105
    %s120 = sphi 0, %s106
    %s124 = sphi 0, %s124
    %s126 = sphi 0, %s124
    %s127 = sphi 0, %s126
    %s141 = sphi 0, %s127
    %s145 = sphi 0, %s145
    %s147 = sphi 0, %s145
    %s148 = sphi 0, %s147
    %s162 = sphi 0, %s148
    %s166 = sphi 0, %s166
    %s168 = sphi 0, %s166
    %s169 = sphi 0, %s168
    %s183 = sphi 0, %s169
    %s189 = sphi 0, %s191
    %s192 = sphi 0, %s189
    %s193 = sphi 0, %s192
    %s209 = sphi 0, %s193
  $region4: #{pose_proxy_forward.1} parent=0 // loop_header_branch
    %16 = sbr.rel (%p14) target = $region8
  $region5: #{pose_proxy_forward.1} parent=0 // loop_body
    %s18 = ssub.s32 %s13, 1
    %s19 = ssub.s32 %s13, 2
    %s26 = sadd.s32 1, %s21
    %p27 = scmp.ge.s32.totalorder %s26, 1
    %s28 = scalar_select %p27, 0, %s26
    %s29 = sadd.s32 1, %s20
    %s30 = scalar_select %p27, %s29, %s20
    %p31 = scmp.ge.s32.totalorder %s30, 2
    %s32 = scalar_select %p31, 0, %s30
    %s33 = ssub.s32 %s20, %s32
    %s34 = ssub.s32 %s21, %s28
    %s35 = sor.u32 %s33, %s34
    %p36 = scmp.eq.s32.totalorder %s35, 0
    %s38 = sadd.s32 %s37, 1
    %s39 = scalar_select %p36, %s37, %s38
    %p42 = pneg %p36
    %p43 = scmp.eq.s32.totalorder %s13, 1
    %p44 = por %p42, %p43
    %p45 = scmp.ne.s32.totalorder %s37, %s40
    %p46 = scmp.eq.s32.totalorder %s13, 0
    %p47 = por %p45, %p46
    %p48 = scmp.ne.s32.totalorder %s37, %s40
    %p49 = scmp.eq.s32.totalorder %s18, 1
    %p50 = por %p48, %p49
    %p51 = scmp.ne.s32.totalorder %s40, %s41
    %p52 = scmp.eq.s32.totalorder %s18, 0
    %p53 = por %p51, %p52
    %p54 = scmp.ne.s32.totalorder %s40, %s41
    %p55 = scmp.eq.s32.totalorder %s19, 1
    %p56 = por %p54, %p55
    %p58 = scmp.ne.s32.totalorder %s41, %s57
    %p59 = scmp.eq.s32.totalorder %s19, 0
    %p60 = por %p58, %p59
    %s62 = sadd.s32 %s61, 1
    %p65 = scmp.eq.s32.totalorder %s13, 1
    %p66 = scmp.ne.s32.totalorder %s61, %s63
    %p67 = scmp.eq.s32.totalorder %s13, 0
    %p68 = por %p66, %p67
    %p69 = scmp.ne.s32.totalorder %s61, %s63
    %p70 = scmp.eq.s32.totalorder %s18, 1
    %p71 = por %p69, %p70
    %p72 = scmp.ne.s32.totalorder %s63, %s64
    %p73 = scmp.eq.s32.totalorder %s18, 0
    %p74 = por %p72, %p73
    %p75 = scmp.ne.s32.totalorder %s63, %s64
    %p76 = scmp.eq.s32.totalorder %s19, 1
    %p77 = por %p75, %p76
    %p79 = scmp.ne.s32.totalorder %s64, %s78
    %p80 = scmp.eq.s32.totalorder %s19, 0
    %p81 = por %p79, %p80
    %s83 = sadd.s32 %s82, 1
    %p86 = scmp.eq.s32.totalorder %s13, 1
    %p87 = scmp.ne.s32.totalorder %s82, %s84
    %p88 = scmp.eq.s32.totalorder %s13, 0
    %p89 = por %p87, %p88
    %p90 = scmp.ne.s32.totalorder %s82, %s84
    %p91 = scmp.eq.s32.totalorder %s18, 1
    %p92 = por %p90, %p91
    %p93 = scmp.ne.s32.totalorder %s84, %s85
    %p94 = scmp.eq.s32.totalorder %s18, 0
    %p95 = por %p93, %p94
    %p96 = scmp.ne.s32.totalorder %s84, %s85
    %p97 = scmp.eq.s32.totalorder %s19, 1
    %p98 = por %p96, %p97
    %p100 = scmp.ne.s32.totalorder %s85, %s99
    %p101 = scmp.eq.s32.totalorder %s19, 0
    %p102 = por %p100, %p101
    %s104 = sadd.s32 %s103, 1
    %p107 = scmp.eq.s32.totalorder %s13, 1
    %p108 = scmp.ne.s32.totalorder %s103, %s105
    %p109 = scmp.eq.s32.totalorder %s13, 0
    %p110 = por %p108, %p109
    %p111 = scmp.ne.s32.totalorder %s103, %s105
    %p112 = scmp.eq.s32.totalorder %s18, 1
    %p113 = por %p111, %p112
    %p114 = scmp.ne.s32.totalorder %s105, %s106
    %p115 = scmp.eq.s32.totalorder %s18, 0
    %p116 = por %p114, %p115
    %p117 = scmp.ne.s32.totalorder %s105, %s106
    %p118 = scmp.eq.s32.totalorder %s19, 1
    %p119 = por %p117, %p118
    %p121 = scmp.ne.s32.totalorder %s106, %s120
    %p122 = scmp.eq.s32.totalorder %s19, 0
    %p123 = por %p121, %p122
    %s125 = sadd.s32 %s124, 1
    %p128 = scmp.eq.s32.totalorder %s13, 1
    %p129 = scmp.ne.s32.totalorder %s124, %s126
    %p130 = scmp.eq.s32.totalorder %s13, 0
    %p131 = por %p129, %p130
    %p132 = scmp.ne.s32.totalorder %s124, %s126
    %p133 = scmp.eq.s32.totalorder %s18, 1
    %p134 = por %p132, %p133
    %p135 = scmp.ne.s32.totalorder %s126, %s127
    %p136 = scmp.eq.s32.totalorder %s18, 0
    %p137 = por %p135, %p136
    %p138 = scmp.ne.s32.totalorder %s126, %s127
    %p139 = scmp.eq.s32.totalorder %s19, 1
    %p140 = por %p138, %p139
    %p142 = scmp.ne.s32.totalorder %s127, %s141
    %p143 = scmp.eq.s32.totalorder %s19, 0
    %p144 = por %p142, %p143
    %s146 = sadd.s32 %s145, 1
    %p149 = scmp.eq.s32.totalorder %s13, 1
    %p150 = scmp.ne.s32.totalorder %s145, %s147
    %p151 = scmp.eq.s32.totalorder %s13, 0
    %p152 = por %p150, %p151
    %p153 = scmp.ne.s32.totalorder %s145, %s147
    %p154 = scmp.eq.s32.totalorder %s18, 1
    %p155 = por %p153, %p154
    %p156 = scmp.ne.s32.totalorder %s147, %s148
    %p157 = scmp.eq.s32.totalorder %s18, 0
    %p158 = por %p156, %p157
    %p159 = scmp.ne.s32.totalorder %s147, %s148
    %p160 = scmp.eq.s32.totalorder %s19, 1
    %p161 = por %p159, %p160
    %p163 = scmp.ne.s32.totalorder %s148, %s162
    %p164 = scmp.eq.s32.totalorder %s19, 0
    %p165 = por %p163, %p164
    %s167 = sadd.s32 %s166, 1
    %p170 = scmp.eq.s32.totalorder %s13, 1
    %p171 = scmp.ne.s32.totalorder %s166, %s168
    %p172 = scmp.eq.s32.totalorder %s13, 0
    %p173 = por %p171, %p172
    %p174 = scmp.ne.s32.totalorder %s166, %s168
    %p175 = scmp.eq.s32.totalorder %s18, 1
    %p176 = por %p174, %p175
    %p177 = scmp.ne.s32.totalorder %s168, %s169
    %p178 = scmp.eq.s32.totalorder %s18, 0
    %p179 = por %p177, %p178
    %p180 = scmp.ne.s32.totalorder %s168, %s169
    %p181 = scmp.eq.s32.totalorder %s19, 1
    %p182 = por %p180, %p181
    %p184 = scmp.ne.s32.totalorder %s169, %s183
    %p185 = scmp.eq.s32.totalorder %s19, 0
    %p186 = por %p184, %p185
    %s187 = ssub.s32 %s20, %s32
    %p188 = scmp.eq.s32.totalorder %s187, 0
    %s190 = sadd.s32 %s189, 1
    %s191 = scalar_select %p188, %s189, %s190
    %p194 = pneg %p188
    %p195 = scmp.eq.s32.totalorder %s13, 1
    %p196 = por %p194, %p195
    %p197 = scmp.ne.s32.totalorder %s189, %s192
    %p198 = scmp.eq.s32.totalorder %s13, 0
    %p199 = por %p197, %p198
    %p200 = scmp.ne.s32.totalorder %s189, %s192
    %p201 = scmp.eq.s32.totalorder %s18, 1
    %p202 = por %p200, %p201
    %p203 = scmp.ne.s32.totalorder %s192, %s193
    %p204 = scmp.eq.s32.totalorder %s18, 0
    %p205 = por %p203, %p204
    %p206 = scmp.ne.s32.totalorder %s192, %s193
    %p207 = scmp.eq.s32.totalorder %s19, 1
    %p208 = por %p206, %p207
    %p210 = scmp.ne.s32.totalorder %s193, %s209
    %p211 = scmp.eq.s32.totalorder %s19, 0
    %p212 = por %p210, %p211
    %p213 = scmp.le.s32.totalorder 1, %s13
    %p214 = scmp.lt.s32.totalorder %s13, 3
    %p215 = pnand %p213, %p214
    %p216 = pneg %p215
    // Predicated region
    $region9: #{pose_proxy_forward.1} parent=5 // pred_check
      _
    $region10: #{pose_proxy_forward.1} parent=5 // pred_check_branch
      %218 = sbr.rel (%p215) target = $region12
    $region11: #{pose_proxy_forward.1} parent=5 // pred_region
      %s219 = ssub.s32 %s13, 1
      // Predicated region
      $region13: #{pose_proxy_forward.1} parent=11 // pred_check
        %p220 = pneg %p74
      $region14: #{pose_proxy_forward.1} parent=11 // pred_check_branch
        %222 = sbr.rel (%p220) target = $region16
      $region15: #{pose_proxy_forward.1} parent=11 // pred_region
        _
      $region16: #{pose_proxy_forward.1} parent=11 // pred_fallthru
        _
      // Predicated region
      $region17: #{pose_proxy_forward.1} parent=11 // pred_check
        %p223 = pneg %p95
      $region18: #{pose_proxy_forward.1} parent=11 // pred_check_branch
        %225 = sbr.rel (%p223) target = $region20
      $region19: #{pose_proxy_forward.1} parent=11 // pred_region
        _
      $region20: #{pose_proxy_forward.1} parent=11 // pred_fallthru
        _
      // Predicated region
      $region21: #{pose_proxy_forward.1} parent=11 // pred_check
        %p226 = pneg %p116
      $region22: #{pose_proxy_forward.1} parent=11 // pred_check_branch
        %228 = sbr.rel (%p226) target = $region24
      $region23: #{pose_proxy_forward.1} parent=11 // pred_region
        _
      $region24: #{pose_proxy_forward.1} parent=11 // pred_fallthru
        _
      // Predicated region
      $region25: #{pose_proxy_forward.1} parent=11 // pred_check
        %p229 = pneg %p137
      $region26: #{pose_proxy_forward.1} parent=11 // pred_check_branch
        %231 = sbr.rel (%p229) target = $region28
      $region27: #{pose_proxy_forward.1} parent=11 // pred_region
        _
      $region28: #{pose_proxy_forward.1} parent=11 // pred_fallthru
        _
      // Predicated region
      $region29: #{pose_proxy_forward.1} parent=11 // pred_check
        %p232 = pneg %p158
      $region30: #{pose_proxy_forward.1} parent=11 // pred_check_branch
        %234 = sbr.rel (%p232) target = $region32
      $region31: #{pose_proxy_forward.1} parent=11 // pred_region
        _
      $region32: #{pose_proxy_forward.1} parent=11 // pred_fallthru
        _
      // Predicated region
      $region33: #{pose_proxy_forward.1} parent=11 // pred_check
        %p235 = pneg %p179
      $region34: #{pose_proxy_forward.1} parent=11 // pred_check_branch
        %237 = sbr.rel (%p235) target = $region36
      $region35: #{pose_proxy_forward.1} parent=11 // pred_region
        _
      $region36: #{pose_proxy_forward.1} parent=11 // pred_fallthru
        _
    $region12: #{pose_proxy_forward.1} parent=5 // pred_fallthru
      _
    %p238 = scmp.lt.s32.totalorder %s13, 2
    // Predicated region
    $region37: #{pose_proxy_forward.1} parent=5 // pred_check
      %p239 = pneg %p238
    $region38: #{pose_proxy_forward.1} parent=5 // pred_check_branch
      %241 = sbr.rel (%p239) target = $region40
    $region39: #{pose_proxy_forward.1} parent=5 // pred_region
      // Predicated region
      $region41: #{pose_proxy_forward.1} parent=39 // pred_check
        %p242 = pneg %p47
      $region42: #{pose_proxy_forward.1} parent=39 // pred_check_branch
        %244 = sbr.rel (%p242) target = $region44
      $region43: #{pose_proxy_forward.1} parent=39 // pred_region
        %s245 = smul.u32 2, %s21
        %p246 = scmp.lt.s32.totalorder %s20, 1
        %s247 = scalar_select %p246, %s20, 1
        %p248 = scmp.lt.s32.totalorder %s245, 1
        %s249 = scalar_select %p248, %s245, 1
        %s250 = smul.addr %s247, 2
        %s251 = sadd.s32 %s249, %s250
        %s252 = smul.addr %s251, 4
        %s253 = scalar_lea.vmem %s0, %s252
        %s254 = smul.u32 2, %s21
      $region44: #{pose_proxy_forward.1} parent=39 // pred_fallthru
        _
    $region40: #{pose_proxy_forward.1} parent=5 // pred_fallthru
      _
    %p255 = scmp.le.s32.totalorder 1, %s13
    %p256 = scmp.lt.s32.totalorder %s13, 3
    %p257 = pnand %p255, %p256
    %p258 = pneg %p257
    // Predicated region
    $region45: #{pose_proxy_forward.1} parent=5 // pred_check
      _
    $region46: #{pose_proxy_forward.1} parent=5 // pred_check_branch
      %260 = sbr.rel (%p257) target = $region48
    $region47: #{pose_proxy_forward.1} parent=5 // pred_region
      %s261 = ssub.s32 %s13, 1
      %s262 = smul.u32 2, %s23
      %p263 = scmp.lt.s32.totalorder %s22, 1
      %s264 = scalar_select %p263, %s22, 1
      %p265 = scmp.lt.s32.totalorder %s262, 1
      %s266 = scalar_select %p265, %s262, 1
      %s267 = smul.addr %s264, 2
      %s268 = sadd.s32 %s266, %s267
      %s269 = smul.addr %s268, 4
      %s270 = scalar_lea.vmem %s0, %s269
      %p271 = pneg %p53
      %p272 = pneg %p50
      %p273 = pneg %p74
      %p274 = pneg %p71
      %p275 = pneg %p95
      %p276 = pneg %p92
      %p277 = pneg %p116
      %p278 = pneg %p113
      %p279 = pneg %p137
      %p280 = pneg %p134
      %p281 = pneg %p158
      %p282 = pneg %p155
      %p283 = pneg %p179
      %p284 = pneg %p176
      %p285 = pneg %p205
      %p286 = pneg %p202
      %p287 = scmp.lt.s32.totalorder %s22, 1
      %s288 = scalar_select %p287, %s22, 1
      %s289 = smul.addr %s288, 32
      %s290 = smul.addr %s289, 8
      %s291 = scalar_lea.vmem %s7, %s290
      %s292 = smul.u32 2, %s23
      %p293 = scmp.lt.s32.totalorder %s22, 1
      %s294 = scalar_select %p293, %s22, 1
      %p295 = scmp.lt.s32.totalorder %s292, 1
      %s296 = scalar_select %p295, %s292, 1
      %s297 = smul.addr %s294, 2
      %s298 = sadd.s32 %s296, %s297
      %s299 = smul.addr %s298, 4
      %s300 = scalar_lea.vmem %s0, %s299
      %s301 = smul.u32 2, %s23
      %p302 = scmp.lt.s32.totalorder %s22, 1
      %s303 = scalar_select %p302, %s22, 1
      %s304 = smul.addr %s303, 32
      %s305 = smul.addr %s304, 8
      %s306 = scalar_lea.vmem %s7, %s305
      %p308 = scmp.eq.s32.totalorder %s23, 0
      // Predicated region
      $region49: #{pose_proxy_forward.1} parent=47 // pred_check
        %p309 = pneg %p308
      $region50: #{pose_proxy_forward.1} parent=47 // pred_check_branch
        %311 = sbr.rel (%p309) target = $region52
      $region51: #{pose_proxy_forward.1} parent=47 // pred_region
        %vm312 = vcmask 7168
        %313 = vst.msk [vmem:[%s306] sm:$0xff] %vm312, -inf
        %314 = vst.msk [vmem:[%s306 + $0x8] sm:$0xff] %vm312, -inf
        %315 = vst.msk [vmem:[%s306 + $0x10] sm:$0xff] %vm312, -inf
        %316 = vst.msk [vmem:[%s306 + $0x18] sm:$0xff] %vm312, -inf
        %317 = vst.msk [vmem:[%s306 + $0x20] sm:$0xff] %vm312, -inf
        %318 = vst.msk [vmem:[%s306 + $0x28] sm:$0xff] %vm312, -inf
        %319 = vst.msk [vmem:[%s306 + $0x30] sm:$0xff] %vm312, -inf
        %320 = vst.msk [vmem:[%s306 + $0x38] sm:$0xff] %vm312, -inf
        %321 = vst.msk [vmem:[%s306 + $0x40] sm:$0xff] %vm312, -inf
        %322 = vst.msk [vmem:[%s306 + $0x48] sm:$0xff] %vm312, -inf
        %323 = vst.msk [vmem:[%s306 + $0x50] sm:$0xff] %vm312, -inf
        %324 = vst.msk [vmem:[%s306 + $0x58] sm:$0xff] %vm312, -inf
        %325 = vst.msk [vmem:[%s306 + $0x60] sm:$0xff] %vm312, -inf
        %326 = vst.msk [vmem:[%s306 + $0x68] sm:$0xff] %vm312, -inf
        %327 = vst.msk [vmem:[%s306 + $0x70] sm:$0xff] %vm312, -inf
        %328 = vst.msk [vmem:[%s306 + $0x78] sm:$0xff] %vm312, -inf
        %329 = vst.msk [vmem:[%s306 + $0x80] sm:$0xff] %vm312, -inf
        %330 = vst.msk [vmem:[%s306 + $0x88] sm:$0xff] %vm312, -inf
        %331 = vst.msk [vmem:[%s306 + $0x90] sm:$0xff] %vm312, -inf
        %332 = vst.msk [vmem:[%s306 + $0x98] sm:$0xff] %vm312, -inf
        %333 = vst.msk [vmem:[%s306 + $0xa0] sm:$0xff] %vm312, -inf
        %334 = vst.msk [vmem:[%s306 + $0xa8] sm:$0xff] %vm312, -inf
        %335 = vst.msk [vmem:[%s306 + $0xb0] sm:$0xff] %vm312, -inf
        %336 = vst.msk [vmem:[%s306 + $0xb8] sm:$0xff] %vm312, -inf
        %337 = vst.msk [vmem:[%s306 + $0xc0] sm:$0xff] %vm312, -inf
        %338 = vst.msk [vmem:[%s306 + $0xc8] sm:$0xff] %vm312, -inf
        %339 = vst.msk [vmem:[%s306 + $0xd0] sm:$0xff] %vm312, -inf
        %340 = vst.msk [vmem:[%s306 + $0xd8] sm:$0xff] %vm312, -inf
        %341 = vst.msk [vmem:[%s306 + $0xe0] sm:$0xff] %vm312, -inf
        %342 = vst.msk [vmem:[%s306 + $0xe8] sm:$0xff] %vm312, -inf
        %343 = vst.msk [vmem:[%s306 + $0xf0] sm:$0xff] %vm312, -inf
        %344 = vst.msk [vmem:[%s306 + $0xf8] sm:$0xff] %vm312, -inf
      $region52: #{pose_proxy_forward.1} parent=47 // pred_fallthru
        _
      %v345 = vld [vmem:[%s300] sm:$0xff]
      %v346 = vld [vmem:[%s1] sm:$0xf]
      %v347 = vld [vmem:[%s1 + $0x4] sm:$0xf]
      %v348 = vld [vmem:[%s1 + $0x8] sm:$0xf]
      %v349 = vld [vmem:[%s1 + $0xc] sm:$0xf]
      %v350 = vld [vmem:[%s1 + $0x10] sm:$0xf]
      %v351 = vld [vmem:[%s1 + $0x14] sm:$0xf]
      %v352 = vld [vmem:[%s1 + $0x18] sm:$0xf]
      %v353 = vld [vmem:[%s1 + $0x1c] sm:$0xf]
      %v354 = vld [vmem:[%s2] sm:$0xff]
      %v355 = vld [vmem:[%s2 + $0x8] sm:$0xff]
      %v356 = vld [vmem:[%s2 + $0x10] sm:$0xff]
      %v357 = vld [vmem:[%s2 + $0x18] sm:$0xff]
      %v358 = vld [vmem:[%s2 + $0x20] sm:$0xff]
      %v359 = vld [vmem:[%s2 + $0x28] sm:$0xff]
      %v360 = vld [vmem:[%s2 + $0x30] sm:$0xff]
      %v361 = vld [vmem:[%s2 + $0x38] sm:$0xff]
      %363 = vset.pattern.permute.xlu0 0
      %364 = vperm.xlu0 %363, %v354
      %v365 = vpop.permute.xlu0 %364
      %368 = vset.pattern.permute.xlu0 0
      %369 = vperm.xlu0 %368, %v355
      %v370 = vpop.permute.xlu0 %369
      %373 = vset.pattern.permute.xlu0 0
      %374 = vperm.xlu0 %373, %v356
      %v375 = vpop.permute.xlu0 %374
      %378 = vset.pattern.permute.xlu0 0
      %379 = vperm.xlu0 %378, %v357
      %v380 = vpop.permute.xlu0 %379
      %383 = vset.pattern.permute.xlu0 0
      %384 = vperm.xlu0 %383, %v358
      %v385 = vpop.permute.xlu0 %384
      %388 = vset.pattern.permute.xlu0 0
      %389 = vperm.xlu0 %388, %v359
      %v390 = vpop.permute.xlu0 %389
      %393 = vset.pattern.permute.xlu0 0
      %394 = vperm.xlu0 %393, %v360
      %v395 = vpop.permute.xlu0 %394
      %398 = vset.pattern.permute.xlu0 0
      %399 = vperm.xlu0 %398, %v361
      %v400 = vpop.permute.xlu0 %399
      %v410 = vunpack.c.l.b16 %v346
      %v411 = vunpack.c.l.b16 %v347
      %v412 = vunpack.c.l.b16 %v348
      %v413 = vunpack.c.l.b16 %v349
      %v414 = vunpack.c.l.b16 %v350
      %v415 = vunpack.c.l.b16 %v351
      %v416 = vunpack.c.l.b16 %v352
      %v417 = vunpack.c.l.b16 %v353
      %v418 = vpack.c.b16 %v411, %v410
      %v419 = vpack.c.b16 %v413, %v412
      %v420 = vpack.c.b16 %v415, %v414
      %v421 = vpack.c.b16 %v417, %v416
      %v423 = vunpack.c.l.b16 %v345
      %v424 = vunpack.c.h.b16 %v345
      %v425 = vpack.c.b16 %v423, %v423
      %v426 = vpack.c.b16 %v424, %v424
      %vm427 = vcmask 64512
      %v429 = vsel %vm427, %v418, 0
      %v432 = vsel %vm427, %v419, 0
      %v435 = vsel %vm427, %v420, 0
      %v438 = vsel %vm427, %v421, 0
      %vm440 = vcmask 1043456
      %v442 = vsel %vm440, %v425, 0
      %v445 = vsel %vm440, %v426, 0
      %447 = vmatprep.subr.bf16.mxu0 %v445
      %448 = vmatpush1.bf16.msra.mxu0 %v442
      %449 = vmatprep.subr.bf16.mxu0 0
      %450 = vmatpush1.bf16.msra.mxu0 0
      %451 = vmatprep.subr.bf16.mxu0 0
      %452 = vmatpush1.bf16.msra.mxu0 0
      %453 = vmatprep.subr.bf16.mxu0 0
      %454 = vmatpush1.bf16.msra.mxu0 0
      %455 = vmatprep.subr.bf16.mxu0 0
      %456 = vmatpush1.bf16.msra.mxu0 0
      %457 = vmatprep.subr.bf16.mxu0 0
      %458 = vmatpush1.bf16.msra.mxu0 0
      %459 = vmatprep.subr.bf16.mxu0 0
      %460 = vmatpush1.bf16.msra.mxu0 0
      %461 = vmatprep.subr.bf16.mxu0 0
      %462 = vmatpush1.bf16.msra.mxu0 0
      %463 = vmatprep.subr.bf16.mxu0 0
      %464 = vmatpush1.bf16.msra.mxu0 0
      %465 = vmatprep.subr.bf16.mxu0 0
      %466 = vmatpush1.bf16.msra.mxu0 0
      %467 = vmatprep.subr.bf16.mxu0 0
      %468 = vmatpush1.bf16.msra.mxu0 0
      %469 = vmatprep.subr.bf16.mxu0 0
      %470 = vmatpush1.bf16.msra.mxu0 0
      %471 = vmatprep.subr.bf16.mxu0 0
      %472 = vmatpush1.bf16.msra.mxu0 0
      %473 = vmatprep.subr.bf16.mxu0 0
      %474 = vmatpush1.bf16.msra.mxu0 0
      %475 = vmatprep.subr.bf16.mxu0 0
      %476 = vmatpush1.bf16.msra.mxu0 0
      %477 = vmatprep.subr.bf16.mxu0 0
      %478 = vmatpush1.bf16.msra.mxu0 0
      %479 = vmatprep.mubr.bf16.mxu0 0
      %480 = vmatmul.mubr.bf16.gmra.mrb[0].mxu0 %v429
      %v481 = vpop.f32.mrb[0].mxu0
      %v482 = vadd.f32 %v365, %v481
      %v483 = vpop.f32.mrb[0].mxu0
      %v484 = vadd.f32 %v365, %v483
      %v485 = vpop.f32.mrb[0].mxu0
      %v486 = vadd.f32 %v370, %v485
      %v487 = vpop.f32.mrb[0].mxu0
      %v488 = vadd.f32 %v370, %v487
      %489 = vmatprep.mubr.bf16.mxu0 0
      %490 = vmatmul.mubr.bf16.gmra.mrb[0].mxu0 %v432
      %v491 = vpop.f32.mrb[0].mxu0
      %v492 = vadd.f32 %v375, %v491
      %v493 = vpop.f32.mrb[0].mxu0
      %v494 = vadd.f32 %v375, %v493
      %v495 = vpop.f32.mrb[0].mxu0
      %v496 = vadd.f32 %v380, %v495
      %v497 = vpop.f32.mrb[0].mxu0
      %v498 = vadd.f32 %v380, %v497
      %499 = vmatprep.mubr.bf16.mxu0 0
      %500 = vmatmul.mubr.bf16.gmra.mrb[0].mxu0 %v435
      %v501 = vpop.f32.mrb[0].mxu0
      %v502 = vadd.f32 %v385, %v501
      %v503 = vpop.f32.mrb[0].mxu0
      %v504 = vadd.f32 %v385, %v503
      %v505 = vpop.f32.mrb[0].mxu0
      %v506 = vadd.f32 %v390, %v505
      %v507 = vpop.f32.mrb[0].mxu0
      %v508 = vadd.f32 %v390, %v507
      %509 = vmatprep.mubr.bf16.mxu0 0
      %510 = vmatmul.mubr.bf16.gmra.mrb[0].mxu0 %v438
      %v511 = vpop.f32.mrb[0].mxu0
      %v512 = vadd.f32 %v395, %v511
      %v513 = vpop.f32.mrb[0].mxu0
      %v514 = vadd.f32 %v395, %v513
      %v515 = vpop.f32.mrb[0].mxu0
      %v516 = vadd.f32 %v400, %v515
      %v517 = vpop.f32.mrb[0].mxu0
      %v518 = vadd.f32 %v400, %v517
      %519 = vdwg.mxu0
      %v520 = vmul.f32 %v482, 0.01
      %v521 = vmul.f32 %v484, 0.01
      %v522 = vmul.f32 %v486, 0.01
      %v523 = vmul.f32 %v488, 0.01
      %v524 = vmul.f32 %v492, 0.01
      %v525 = vmul.f32 %v494, 0.01
      %v526 = vmul.f32 %v496, 0.01
      %v527 = vmul.f32 %v498, 0.01
      %v528 = vmul.f32 %v502, 0.01
      %v529 = vmul.f32 %v504, 0.01
      %v530 = vmul.f32 %v506, 0.01
      %v531 = vmul.f32 %v508, 0.01
      %v532 = vmul.f32 %v512, 0.01
      %v533 = vmul.f32 %v514, 0.01
      %v534 = vmul.f32 %v516, 0.01
      %v535 = vmul.f32 %v518, 0.01
      %v536 = vmax.f32 %v482, %v520
      %v537 = vmax.f32 %v484, %v521
      %v538 = vmax.f32 %v486, %v522
      %v539 = vmax.f32 %v488, %v523
      %v540 = vmax.f32 %v492, %v524
      %v541 = vmax.f32 %v494, %v525
      %v542 = vmax.f32 %v496, %v526
      %v543 = vmax.f32 %v498, %v527
      %v544 = vmax.f32 %v502, %v528
      %v545 = vmax.f32 %v504, %v529
      %v546 = vmax.f32 %v506, %v530
      %v547 = vmax.f32 %v508, %v531
      %v548 = vmax.f32 %v512, %v532
      %v549 = vmax.f32 %v514, %v533
      %v550 = vmax.f32 %v516, %v534
      %v551 = vmax.f32 %v518, %v535
      %v552 = vld [vmem:[%s3] sm:$0xf]
      %v553 = vld [vmem:[%s3 + $0x4] sm:$0xf]
      %v554 = vld [vmem:[%s3 + $0x8] sm:$0xf]
      %v555 = vld [vmem:[%s3 + $0xc] sm:$0xf]
      %v556 = vld [vmem:[%s3 + $0x10] sm:$0xf]
      %v557 = vld [vmem:[%s3 + $0x14] sm:$0xf]
      %v558 = vld [vmem:[%s3 + $0x18] sm:$0xf]
      %v559 = vld [vmem:[%s3 + $0x1c] sm:$0xf]
      %v560 = vld [vmem:[%s3 + $0x20] sm:$0xf]
      %v561 = vld [vmem:[%s3 + $0x24] sm:$0xf]
      %v562 = vld [vmem:[%s3 + $0x28] sm:$0xf]
      %v563 = vld [vmem:[%s3 + $0x2c] sm:$0xf]
      %v564 = vld [vmem:[%s3 + $0x30] sm:$0xf]
      %v565 = vld [vmem:[%s3 + $0x34] sm:$0xf]
      %v566 = vld [vmem:[%s3 + $0x38] sm:$0xf]
      %v567 = vld [vmem:[%s3 + $0x3c] sm:$0xf]
      %v568 = vpack.c.bf16 %v538, %v536
      %v569 = vpack.c.bf16 %v539, %v537
      %v570 = vpack.c.bf16 %v542, %v540
      %v571 = vpack.c.bf16 %v543, %v541
      %v572 = vpack.c.bf16 %v546, %v544
      %v573 = vpack.c.bf16 %v547, %v545
      %v574 = vpack.c.bf16 %v550, %v548
      %v575 = vpack.c.bf16 %v551, %v549
      %v576 = vld [vmem:[%s4] sm:$0xff]
      %v577 = vld [vmem:[%s4 + $0x8] sm:$0xff]
      %v578 = vld [vmem:[%s4 + $0x10] sm:$0xff]
      %v579 = vld [vmem:[%s4 + $0x18] sm:$0xff]
      %v580 = vld [vmem:[%s4 + $0x20] sm:$0xff]
      %v581 = vld [vmem:[%s4 + $0x28] sm:$0xff]
      %v582 = vld [vmem:[%s4 + $0x30] sm:$0xff]
      %v583 = vld [vmem:[%s4 + $0x38] sm:$0xff]
      %v584 = vld [vmem:[%s4 + $0x40] sm:$0xff]
      %v585 = vld [vmem:[%s4 + $0x48] sm:$0xff]
      %v586 = vld [vmem:[%s4 + $0x50] sm:$0xff]
      %v587 = vld [vmem:[%s4 + $0x58] sm:$0xff]
      %v588 = vld [vmem:[%s4 + $0x60] sm:$0xff]
      %v589 = vld [vmem:[%s4 + $0x68] sm:$0xff]
      %v590 = vld [vmem:[%s4 + $0x70] sm:$0xff]
      %v591 = vld [vmem:[%s4 + $0x78] sm:$0xff]
      %593 = vset.pattern.permute.xlu0 0
      %594 = vperm.xlu0 %593, %v576
      %v595 = vpop.permute.xlu0 %594
      %598 = vset.pattern.permute.xlu0 0
      %599 = vperm.xlu0 %598, %v577
      %v600 = vpop.permute.xlu0 %599
      %603 = vset.pattern.permute.xlu0 0
      %604 = vperm.xlu0 %603, %v578
      %v605 = vpop.permute.xlu0 %604
      %608 = vset.pattern.permute.xlu0 0
      %609 = vperm.xlu0 %608, %v579
      %v610 = vpop.permute.xlu0 %609
      %613 = vset.pattern.permute.xlu0 0
      %614 = vperm.xlu0 %613, %v580
      %v615 = vpop.permute.xlu0 %614
      %618 = vset.pattern.permute.xlu0 0
      %619 = vperm.xlu0 %618, %v581
      %v620 = vpop.permute.xlu0 %619
      %623 = vset.pattern.permute.xlu0 0
      %624 = vperm.xlu0 %623, %v582
      %v625 = vpop.permute.xlu0 %624
      %628 = vset.pattern.permute.xlu0 0
      %629 = vperm.xlu0 %628, %v583
      %v630 = vpop.permute.xlu0 %629
      %633 = vset.pattern.permute.xlu0 0
      %634 = vperm.xlu0 %633, %v584
      %v635 = vpop.permute.xlu0 %634
      %638 = vset.pattern.permute.xlu0 0
      %639 = vperm.xlu0 %638, %v585
      %v640 = vpop.permute.xlu0 %639
      %643 = vset.pattern.permute.xlu0 0
      %644 = vperm.xlu0 %643, %v586
      %v645 = vpop.permute.xlu0 %644
      %648 = vset.pattern.permute.xlu0 0
      %649 = vperm.xlu0 %648, %v587
      %v650 = vpop.permute.xlu0 %649
      %653 = vset.pattern.permute.xlu0 0
      %654 = vperm.xlu0 %653, %v588
      %v655 = vpop.permute.xlu0 %654
      %658 = vset.pattern.permute.xlu0 0
      %659 = vperm.xlu0 %658, %v589
      %v660 = vpop.permute.xlu0 %659
      %663 = vset.pattern.permute.xlu0 0
      %664 = vperm.xlu0 %663, %v590
      %v665 = vpop.permute.xlu0 %664
      %668 = vset.pattern.permute.xlu0 0
      %669 = vperm.xlu0 %668, %v591
      %v670 = vpop.permute.xlu0 %669
      %v688 = vunpack.c.l.b16 %v552
      %v689 = vunpack.c.l.b16 %v553
      %v690 = vunpack.c.l.b16 %v554
      %v691 = vunpack.c.l.b16 %v555
      %v692 = vunpack.c.l.b16 %v556
      %v693 = vunpack.c.l.b16 %v557
      %v694 = vunpack.c.l.b16 %v558
      %v695 = vunpack.c.l.b16 %v559
      %v696 = vunpack.c.l.b16 %v560
      %v697 = vunpack.c.l.b16 %v561
      %v698 = vunpack.c.l.b16 %v562
      %v699 = vunpack.c.l.b16 %v563
      %v700 = vunpack.c.l.b16 %v564
      %v701 = vunpack.c.l.b16 %v565
      %v702 = vunpack.c.l.b16 %v566
      %v703 = vunpack.c.l.b16 %v567
      %v704 = vpack.c.b16 %v689, %v688
      %v705 = vpack.c.b16 %v691, %v690
      %v706 = vpack.c.b16 %v693, %v692
      %v707 = vpack.c.b16 %v695, %v694
      %v708 = vpack.c.b16 %v697, %v696
      %v709 = vpack.c.b16 %v699, %v698
      %v710 = vpack.c.b16 %v701, %v700
      %v711 = vpack.c.b16 %v703, %v702
      %vm712 = vcmask 523264
      %v714 = vsel %vm712, %v704, 0
      %v717 = vsel %vm712, %v705, 0
      %v720 = vsel %vm712, %v706, 0
      %v723 = vsel %vm712, %v707, 0
      %v726 = vsel %vm712, %v708, 0
      %v729 = vsel %vm712, %v709, 0
      %v732 = vsel %vm712, %v710, 0
      %v735 = vsel %vm712, %v711, 0
      %737 = vmatprep.subr.bf16.mxu0 %v569
      %738 = vmatpush1.bf16.msra.mxu0 %v568
      %739 = vmatprep.subr.bf16.mxu0 %v571
      %740 = vmatpush1.bf16.msra.mxu0 %v570
      %741 = vmatprep.subr.bf16.mxu0 %v573
      %742 = vmatpush1.bf16.msra.mxu0 %v572
      %743 = vmatprep.subr.bf16.mxu0 %v575
      %744 = vmatpush1.bf16.msra.mxu0 %v574
      %745 = vmatprep.subr.bf16.mxu0 0
      %746 = vmatpush1.bf16.msra.mxu0 0
      %747 = vmatprep.subr.bf16.mxu0 0
      %748 = vmatpush1.bf16.msra.mxu0 0
      %749 = vmatprep.subr.bf16.mxu0 0
      %750 = vmatpush1.bf16.msra.mxu0 0
      %751 = vmatprep.subr.bf16.mxu0 0
      %752 = vmatpush1.bf16.msra.mxu0 0
      %753 = vmatprep.subr.bf16.mxu0 0
      %754 = vmatpush1.bf16.msra.mxu0 0
      %755 = vmatprep.subr.bf16.mxu0 0
      %756 = vmatpush1.bf16.msra.mxu0 0
      %757 = vmatprep.subr.bf16.mxu0 0
      %758 = vmatpush1.bf16.msra.mxu0 0
      %759 = vmatprep.subr.bf16.mxu0 0
      %760 = vmatpush1.bf16.msra.mxu0 0
      %761 = vmatprep.subr.bf16.mxu0 0
      %762 = vmatpush1.bf16.msra.mxu0 0
      %763 = vmatprep.subr.bf16.mxu0 0
      %764 = vmatpush1.bf16.msra.mxu0 0
      %765 = vmatprep.subr.bf16.mxu0 0
      %766 = vmatpush1.bf16.msra.mxu0 0
      %767 = vmatprep.subr.bf16.mxu0 0
      %768 = vmatpush1.bf16.msra.mxu0 0
      %769 = vmatprep.mubr.bf16.mxu0 0
      %770 = vmatmul.mubr.bf16.gmra.mrb[0].mxu0 %v714
      %v771 = vpop.f32.mrb[0].mxu0
      %v772 = vadd.f32 %v595, %v771
      %v773 = vpop.f32.mrb[0].mxu0
      %v774 = vadd.f32 %v595, %v773
      %v775 = vpop.f32.mrb[0].mxu0
      %v776 = vadd.f32 %v600, %v775
      %v777 = vpop.f32.mrb[0].mxu0
      %v778 = vadd.f32 %v600, %v777
      %779 = vmatprep.mubr.bf16.mxu0 0
      %780 = vmatmul.mubr.bf16.gmra.mrb[0].mxu0 %v717
      %v781 = vpop.f32.mrb[0].mxu0
      %v782 = vadd.f32 %v605, %v781
      %v783 = vpop.f32.mrb[0].mxu0
      %v784 = vadd.f32 %v605, %v783
      %v785 = vpop.f32.mrb[0].mxu0
      %v786 = vadd.f32 %v610, %v785
      %v787 = vpop.f32.mrb[0].mxu0
      %v788 = vadd.f32 %v610, %v787
      %789 = vmatprep.mubr.bf16.mxu0 0
      %790 = vmatmul.mubr.bf16.gmra.mrb[0].mxu0 %v720
      %v791 = vpop.f32.mrb[0].mxu0
      %v792 = vadd.f32 %v615, %v791
      %v793 = vpop.f32.mrb[0].mxu0
      %v794 = vadd.f32 %v615, %v793
      %v795 = vpop.f32.mrb[0].mxu0
      %v796 = vadd.f32 %v620, %v795
      %v797 = vpop.f32.mrb[0].mxu0
      %v798 = vadd.f32 %v620, %v797
      %799 = vmatprep.mubr.bf16.mxu0 0
      %800 = vmatmul.mubr.bf16.gmra.mrb[0].mxu0 %v723
      %v801 = vpop.f32.mrb[0].mxu0
      %v802 = vadd.f32 %v625, %v801
      %v803 = vpop.f32.mrb[0].mxu0
      %v804 = vadd.f32 %v625, %v803
      %v805 = vpop.f32.mrb[0].mxu0
      %v806 = vadd.f32 %v630, %v805
      %v807 = vpop.f32.mrb[0].mxu0
      %v808 = vadd.f32 %v630, %v807
      %809 = vmatprep.mubr.bf16.mxu0 0
      %810 = vmatmul.mubr.bf16.gmra.mrb[0].mxu0 %v726
      %v811 = vpop.f32.mrb[0].mxu0
      %v812 = vadd.f32 %v635, %v811
      %v813 = vpop.f32.mrb[0].mxu0
      %v814 = vadd.f32 %v635, %v813
      %v815 = vpop.f32.mrb[0].mxu0
      %v816 = vadd.f32 %v640, %v815
      %v817 = vpop.f32.mrb[0].mxu0
      %v818 = vadd.f32 %v640, %v817
      %819 = vmatprep.mubr.bf16.mxu0 0
      %820 = vmatmul.mubr.bf16.gmra.mrb[0].mxu0 %v729
      %v821 = vpop.f32.mrb[0].mxu0
      %v822 = vadd.f32 %v645, %v821
      %v823 = vpop.f32.mrb[0].mxu0
      %v824 = vadd.f32 %v645, %v823
      %v825 = vpop.f32.mrb[0].mxu0
      %v826 = vadd.f32 %v650, %v825
      %v827 = vpop.f32.mrb[0].mxu0
      %v828 = vadd.f32 %v650, %v827
      %829 = vmatprep.mubr.bf16.mxu0 0
      %830 = vmatmul.mubr.bf16.gmra.mrb[0].mxu0 %v732
      %v831 = vpop.f32.mrb[0].mxu0
      %v832 = vadd.f32 %v655, %v831
      %v833 = vpop.f32.mrb[0].mxu0
      %v834 = vadd.f32 %v655, %v833
      %v835 = vpop.f32.mrb[0].mxu0
      %v836 = vadd.f32 %v660, %v835
      %v837 = vpop.f32.mrb[0].mxu0
      %v838 = vadd.f32 %v660, %v837
      %839 = vmatprep.mubr.bf16.mxu0 0
      %840 = vmatmul.mubr.bf16.gmra.mrb[0].mxu0 %v735
      %v841 = vpop.f32.mrb[0].mxu0
      %v842 = vadd.f32 %v665, %v841
      %v843 = vpop.f32.mrb[0].mxu0
      %v844 = vadd.f32 %v665, %v843
      %v845 = vpop.f32.mrb[0].mxu0
      %v846 = vadd.f32 %v670, %v845
      %v847 = vpop.f32.mrb[0].mxu0
      %v848 = vadd.f32 %v670, %v847
      %849 = vdwg.mxu0
      %v850 = vmul.f32 %v772, 0.01
      %v851 = vmul.f32 %v774, 0.01
      %v852 = vmul.f32 %v776, 0.01
      %v853 = vmul.f32 %v778, 0.01
      %v854 = vmul.f32 %v782, 0.01
      %v855 = vmul.f32 %v784, 0.01
      %v856 = vmul.f32 %v786, 0.01
      %v857 = vmul.f32 %v788, 0.01
      %v858 = vmul.f32 %v792, 0.01
      %v859 = vmul.f32 %v794, 0.01
      %v860 = vmul.f32 %v796, 0.01
      %v861 = vmul.f32 %v798, 0.01
      %v862 = vmul.f32 %v802, 0.01
      %v863 = vmul.f32 %v804, 0.01
      %v864 = vmul.f32 %v806, 0.01
      %v865 = vmul.f32 %v808, 0.01
      %v866 = vmul.f32 %v812, 0.01
      %v867 = vmul.f32 %v814, 0.01
      %v868 = vmul.f32 %v816, 0.01
      %v869 = vmul.f32 %v818, 0.01
      %v870 = vmul.f32 %v822, 0.01
      %v871 = vmul.f32 %v824, 0.01
      %v872 = vmul.f32 %v826, 0.01
      %v873 = vmul.f32 %v828, 0.01
      %v874 = vmul.f32 %v832, 0.01
      %v875 = vmul.f32 %v834, 0.01
      %v876 = vmul.f32 %v836, 0.01
      %v877 = vmul.f32 %v838, 0.01
      %v878 = vmul.f32 %v842, 0.01
      %v879 = vmul.f32 %v844, 0.01
      %v880 = vmul.f32 %v846, 0.01
      %v881 = vmul.f32 %v848, 0.01
      %v882 = vmax.f32 %v772, %v850
      %v883 = vmax.f32 %v774, %v851
      %v884 = vmax.f32 %v776, %v852
      %v885 = vmax.f32 %v778, %v853
      %v886 = vmax.f32 %v782, %v854
      %v887 = vmax.f32 %v784, %v855
      %v888 = vmax.f32 %v786, %v856
      %v889 = vmax.f32 %v788, %v857
      %v890 = vmax.f32 %v792, %v858
      %v891 = vmax.f32 %v794, %v859
      %v892 = vmax.f32 %v796, %v860
      %v893 = vmax.f32 %v798, %v861
      %v894 = vmax.f32 %v802, %v862
      %v895 = vmax.f32 %v804, %v863
      %v896 = vmax.f32 %v806, %v864
      %v897 = vmax.f32 %v808, %v865
      %v898 = vmax.f32 %v812, %v866
      %v899 = vmax.f32 %v814, %v867
      %v900 = vmax.f32 %v816, %v868
      %v901 = vmax.f32 %v818, %v869
      %v902 = vmax.f32 %v822, %v870
      %v903 = vmax.f32 %v824, %v871
      %v904 = vmax.f32 %v826, %v872
      %v905 = vmax.f32 %v828, %v873
      %v906 = vmax.f32 %v832, %v874
      %v907 = vmax.f32 %v834, %v875
      %v908 = vmax.f32 %v836, %v876
      %v909 = vmax.f32 %v838, %v877
      %v910 = vmax.f32 %v842, %v878
      %v911 = vmax.f32 %v844, %v879
      %v912 = vmax.f32 %v846, %v880
      %v913 = vmax.f32 %v848, %v881
      %v914 = vld [vmem:[%s5] sm:$0xf]
      %v915 = vld [vmem:[%s5 + $0x4] sm:$0xf]
      %v916 = vld [vmem:[%s5 + $0x8] sm:$0xf]
      %v917 = vld [vmem:[%s5 + $0xc] sm:$0xf]
      %v918 = vld [vmem:[%s5 + $0x10] sm:$0xf]
      %v919 = vld [vmem:[%s5 + $0x14] sm:$0xf]
      %v920 = vld [vmem:[%s5 + $0x18] sm:$0xf]
      %v921 = vld [vmem:[%s5 + $0x1c] sm:$0xf]
      %v922 = vld [vmem:[%s5 + $0x20] sm:$0xf]
      %v923 = vld [vmem:[%s5 + $0x24] sm:$0xf]
      %v924 = vld [vmem:[%s5 + $0x28] sm:$0xf]
      %v925 = vld [vmem:[%s5 + $0x2c] sm:$0xf]
      %v926 = vld [vmem:[%s5 + $0x30] sm:$0xf]
      %v927 = vld [vmem:[%s5 + $0x34] sm:$0xf]
      %v928 = vld [vmem:[%s5 + $0x38] sm:$0xf]
      %v929 = vld [vmem:[%s5 + $0x3c] sm:$0xf]
      %v930 = vld [vmem:[%s5 + $0x40] sm:$0xf]
      %v931 = vld [vmem:[%s5 + $0x44] sm:$0xf]
      %v932 = vld [vmem:[%s5 + $0x48] sm:$0xf]
      %v933 = vld [vmem:[%s5 + $0x4c] sm:$0xf]
      %v934 = vld [vmem:[%s5 + $0x50] sm:$0xf]
      %v935 = vld [vmem:[%s5 + $0x54] sm:$0xf]
      %v936 = vld [vmem:[%s5 + $0x58] sm:$0xf]
      %v937 = vld [vmem:[%s5 + $0x5c] sm:$0xf]
      %v938 = vld [vmem:[%s5 + $0x60] sm:$0xf]
      %v939 = vld [vmem:[%s5 + $0x64] sm:$0xf]
      %v940 = vld [vmem:[%s5 + $0x68] sm:$0xf]
      %v941 = vld [vmem:[%s5 + $0x6c] sm:$0xf]
      %v942 = vld [vmem:[%s5 + $0x70] sm:$0xf]
      %v943 = vld [vmem:[%s5 + $0x74] sm:$0xf]
      %v944 = vld [vmem:[%s5 + $0x78] sm:$0xf]
      %v945 = vld [vmem:[%s5 + $0x7c] sm:$0xf]
      %v946 = vpack.c.bf16 %v884, %v882
      %v947 = vpack.c.bf16 %v885, %v883
      %v948 = vpack.c.bf16 %v888, %v886
      %v949 = vpack.c.bf16 %v889, %v887
      %v950 = vpack.c.bf16 %v892, %v890
      %v951 = vpack.c.bf16 %v893, %v891
      %v952 = vpack.c.bf16 %v896, %v894
      %v953 = vpack.c.bf16 %v897, %v895
      %v954 = vpack.c.bf16 %v900, %v898
      %v955 = vpack.c.bf16 %v901, %v899
      %v956 = vpack.c.bf16 %v904, %v902
      %v957 = vpack.c.bf16 %v905, %v903
      %v958 = vpack.c.bf16 %v908, %v906
      %v959 = vpack.c.bf16 %v909, %v907
      %v960 = vpack.c.bf16 %v912, %v910
      %v961 = vpack.c.bf16 %v913, %v911
      %v962 = vld [vmem:[%s6] sm:$0xff]
      %v963 = vld [vmem:[%s6 + $0x8] sm:$0xff]
      %v964 = vld [vmem:[%s6 + $0x10] sm:$0xff]
      %v965 = vld [vmem:[%s6 + $0x18] sm:$0xff]
      %v966 = vld [vmem:[%s6 + $0x20] sm:$0xff]
      %v967 = vld [vmem:[%s6 + $0x28] sm:$0xff]
      %v968 = vld [vmem:[%s6 + $0x30] sm:$0xff]
      %v969 = vld [vmem:[%s6 + $0x38] sm:$0xff]
      %v970 = vld [vmem:[%s6 + $0x40] sm:$0xff]
      %v971 = vld [vmem:[%s6 + $0x48] sm:$0xff]
      %v972 = vld [vmem:[%s6 + $0x50] sm:$0xff]
      %v973 = vld [vmem:[%s6 + $0x58] sm:$0xff]
      %v974 = vld [vmem:[%s6 + $0x60] sm:$0xff]
      %v975 = vld [vmem:[%s6 + $0x68] sm:$0xff]
      %v976 = vld [vmem:[%s6 + $0x70] sm:$0xff]
      %v977 = vld [vmem:[%s6 + $0x78] sm:$0xff]
      %v978 = vld [vmem:[%s6 + $0x80] sm:$0xff]
      %v979 = vld [vmem:[%s6 + $0x88] sm:$0xff]
      %v980 = vld [vmem:[%s6 + $0x90] sm:$0xff]
      %v981 = vld [vmem:[%s6 + $0x98] sm:$0xff]
      %v982 = vld [vmem:[%s6 + $0xa0] sm:$0xff]
      %v983 = vld [vmem:[%s6 + $0xa8] sm:$0xff]
      %v984 = vld [vmem:[%s6 + $0xb0] sm:$0xff]
      %v985 = vld [vmem:[%s6 + $0xb8] sm:$0xff]
      %v986 = vld [vmem:[%s6 + $0xc0] sm:$0xff]
      %v987 = vld [vmem:[%s6 + $0xc8] sm:$0xff]
      %v988 = vld [vmem:[%s6 + $0xd0] sm:$0xff]
      %v989 = vld [vmem:[%s6 + $0xd8] sm:$0xff]
      %v990 = vld [vmem:[%s6 + $0xe0] sm:$0xff]
      %v991 = vld [vmem:[%s6 + $0xe8] sm:$0xff]
      %v992 = vld [vmem:[%s6 + $0xf0] sm:$0xff]
      %v993 = vld [vmem:[%s6 + $0xf8] sm:$0xff]
      %995 = vset.pattern.permute.xlu0 0
      %996 = vperm.xlu0 %995, %v962
      %v997 = vpop.permute.xlu0 %996
      %1000 = vset.pattern.permute.xlu0 0
      %1001 = vperm.xlu0 %1000, %v963
      %v1002 = vpop.permute.xlu0 %1001
      %1005 = vset.pattern.permute.xlu0 0
      %1006 = vperm.xlu0 %1005, %v964
      %v1007 = vpop.permute.xlu0 %1006
      %1010 = vset.pattern.permute.xlu0 0
      %1011 = vperm.xlu0 %1010, %v965
      %v1012 = vpop.permute.xlu0 %1011
      %1015 = vset.pattern.permute.xlu0 0
      %1016 = vperm.xlu0 %1015, %v966
      %v1017 = vpop.permute.xlu0 %1016
      %1020 = vset.pattern.permute.xlu0 0
      %1021 = vperm.xlu0 %1020, %v967
      %v1022 = vpop.permute.xlu0 %1021
      %1025 = vset.pattern.permute.xlu0 0
      %1026 = vperm.xlu0 %1025, %v968
      %v1027 = vpop.permute.xlu0 %1026
      %1030 = vset.pattern.permute.xlu0 0
      %1031 = vperm.xlu0 %1030, %v969
      %v1032 = vpop.permute.xlu0 %1031
      %1035 = vset.pattern.permute.xlu0 0
      %1036 = vperm.xlu0 %1035, %v970
      %v1037 = vpop.permute.xlu0 %1036
      %1040 = vset.pattern.permute.xlu0 0
      %1041 = vperm.xlu0 %1040, %v971
      %v1042 = vpop.permute.xlu0 %1041
      %1045 = vset.pattern.permute.xlu0 0
      %1046 = vperm.xlu0 %1045, %v972
      %v1047 = vpop.permute.xlu0 %1046
      %1050 = vset.pattern.permute.xlu0 0
      %1051 = vperm.xlu0 %1050, %v973
      %v1052 = vpop.permute.xlu0 %1051
      %1055 = vset.pattern.permute.xlu0 0
      %1056 = vperm.xlu0 %1055, %v974
      %v1057 = vpop.permute.xlu0 %1056
      %1060 = vset.pattern.permute.xlu0 0
      %1061 = vperm.xlu0 %1060, %v975
      %v1062 = vpop.permute.xlu0 %1061
      %1065 = vset.pattern.permute.xlu0 0
      %1066 = vperm.xlu0 %1065, %v976
      %v1067 = vpop.permute.xlu0 %1066
      %1070 = vset.pattern.permute.xlu0 0
      %1071 = vperm.xlu0 %1070, %v977
      %v1072 = vpop.permute.xlu0 %1071
      %1075 = vset.pattern.permute.xlu0 0
      %1076 = vperm.xlu0 %1075, %v978
      %v1077 = vpop.permute.xlu0 %1076
      %1080 = vset.pattern.permute.xlu0 0
      %1081 = vperm.xlu0 %1080, %v979
      %v1082 = vpop.permute.xlu0 %1081
      %1085 = vset.pattern.permute.xlu0 0
      %1086 = vperm.xlu0 %1085, %v980
      %v1087 = vpop.permute.xlu0 %1086
      %1090 = vset.pattern.permute.xlu0 0
      %1091 = vperm.xlu0 %1090, %v981
      %v1092 = vpop.permute.xlu0 %1091
      %1095 = vset.pattern.permute.xlu0 0
      %1096 = vperm.xlu0 %1095, %v982
      %v1097 = vpop.permute.xlu0 %1096
      %1100 = vset.pattern.permute.xlu0 0
      %1101 = vperm.xlu0 %1100, %v983
      %v1102 = vpop.permute.xlu0 %1101
      %1105 = vset.pattern.permute.xlu0 0
      %1106 = vperm.xlu0 %1105, %v984
      %v1107 = vpop.permute.xlu0 %1106
      %1110 = vset.pattern.permute.xlu0 0
      %1111 = vperm.xlu0 %1110, %v985
      %v1112 = vpop.permute.xlu0 %1111
      %1115 = vset.pattern.permute.xlu0 0
      %1116 = vperm.xlu0 %1115, %v986
      %v1117 = vpop.permute.xlu0 %1116
      %1120 = vset.pattern.permute.xlu0 0
      %1121 = vperm.xlu0 %1120, %v987
      %v1122 = vpop.permute.xlu0 %1121
      %1125 = vset.pattern.permute.xlu0 0
      %1126 = vperm.xlu0 %1125, %v988
      %v1127 = vpop.permute.xlu0 %1126
      %1130 = vset.pattern.permute.xlu0 0
      %1131 = vperm.xlu0 %1130, %v989
      %v1132 = vpop.permute.xlu0 %1131
      %1135 = vset.pattern.permute.xlu0 0
      %1136 = vperm.xlu0 %1135, %v990
      %v1137 = vpop.permute.xlu0 %1136
      %1140 = vset.pattern.permute.xlu0 0
      %1141 = vperm.xlu0 %1140, %v991
      %v1142 = vpop.permute.xlu0 %1141
      %1145 = vset.pattern.permute.xlu0 0
      %1146 = vperm.xlu0 %1145, %v992
      %v1147 = vpop.permute.xlu0 %1146
      %1150 = vset.pattern.permute.xlu0 0
      %1151 = vperm.xlu0 %1150, %v993
      %v1152 = vpop.permute.xlu0 %1151
      %v1186 = vunpack.c.l.b16 %v914
      %v1187 = vunpack.c.l.b16 %v915
      %v1188 = vunpack.c.l.b16 %v916
      %v1189 = vunpack.c.l.b16 %v917
      %v1190 = vunpack.c.l.b16 %v918
      %v1191 = vunpack.c.l.b16 %v919
      %v1192 = vunpack.c.l.b16 %v920
      %v1193 = vunpack.c.l.b16 %v921
      %v1194 = vunpack.c.l.b16 %v922
      %v1195 = vunpack.c.l.b16 %v923
      %v1196 = vunpack.c.l.b16 %v924
      %v1197 = vunpack.c.l.b16 %v925
      %v1198 = vunpack.c.l.b16 %v926
      %v1199 = vunpack.c.l.b16 %v927
      %v1200 = vunpack.c.l.b16 %v928
      %v1201 = vunpack.c.l.b16 %v929
      %v1202 = vunpack.c.l.b16 %v930
      %v1203 = vunpack.c.l.b16 %v931
      %v1204 = vunpack.c.l.b16 %v932
      %v1205 = vunpack.c.l.b16 %v933
      %v1206 = vunpack.c.l.b16 %v934
      %v1207 = vunpack.c.l.b16 %v935
      %v1208 = vunpack.c.l.b16 %v936
      %v1209 = vunpack.c.l.b16 %v937
      %v1210 = vunpack.c.l.b16 %v938
      %v1211 = vunpack.c.l.b16 %v939
      %v1212 = vunpack.c.l.b16 %v940
      %v1213 = vunpack.c.l.b16 %v941
      %v1214 = vunpack.c.l.b16 %v942
      %v1215 = vunpack.c.l.b16 %v943
      %v1216 = vunpack.c.l.b16 %v944
      %v1217 = vunpack.c.l.b16 %v945
      %v1218 = vpack.c.b16 %v1187, %v1186
      %v1219 = vpack.c.b16 %v1189, %v1188
      %v1220 = vpack.c.b16 %v1191, %v1190
      %v1221 = vpack.c.b16 %v1193, %v1192
      %v1222 = vpack.c.b16 %v1195, %v1194
      %v1223 = vpack.c.b16 %v1197, %v1196
      %v1224 = vpack.c.b16 %v1199, %v1198
      %v1225 = vpack.c.b16 %v1201, %v1200
      %v1226 = vpack.c.b16 %v1203, %v1202
      %v1227 = vpack.c.b16 %v1205, %v1204
      %v1228 = vpack.c.b16 %v1207, %v1206
      %v1229 = vpack.c.b16 %v1209, %v1208
      %v1230 = vpack.c.b16 %v1211, %v1210
      %v1231 = vpack.c.b16 %v1213, %v1212
      %v1232 = vpack.c.b16 %v1215, %v1214
      %v1233 = vpack.c.b16 %v1217, %v1216
      %1250 = vmatprep.subr.bf16.mxu0 %v947
      %1251 = vmatpush1.bf16.msra.mxu0 %v946
      %1252 = vmatprep.subr.bf16.mxu0 %v949
      %1253 = vmatpush1.bf16.msra.mxu0 %v948
      %1254 = vmatprep.subr.bf16.mxu0 %v951
      %1255 = vmatpush1.bf16.msra.mxu0 %v950
      %1256 = vmatprep.subr.bf16.mxu0 %v953
      %1257 = vmatpush1.bf16.msra.mxu0 %v952
      %1258 = vmatprep.subr.bf16.mxu0 %v955
      %1259 = vmatpush1.bf16.msra.mxu0 %v954
      %1260 = vmatprep.subr.bf16.mxu0 %v957
      %1261 = vmatpush1.bf16.msra.mxu0 %v956
      %1262 = vmatprep.subr.bf16.mxu0 %v959
      %1263 = vmatpush1.bf16.msra.mxu0 %v958
      %1264 = vmatprep.subr.bf16.mxu0 %v961
      %1265 = vmatpush1.bf16.msra.mxu0 %v960
      %1266 = vmatprep.subr.bf16.mxu0 0
      %1267 = vmatpush1.bf16.msra.mxu0 0
      %1268 = vmatprep.subr.bf16.mxu0 0
      %1269 = vmatpush1.bf16.msra.mxu0 0
      %1270 = vmatprep.subr.bf16.mxu0 0
      %1271 = vmatpush1.bf16.msra.mxu0 0
      %1272 = vmatprep.subr.bf16.mxu0 0
      %1273 = vmatpush1.bf16.msra.mxu0 0
      %1274 = vmatprep.subr.bf16.mxu0 0
      %1275 = vmatpush1.bf16.msra.mxu0 0
      %1276 = vmatprep.subr.bf16.mxu0 0
      %1277 = vmatpush1.bf16.msra.mxu0 0
      %1278 = vmatprep.subr.bf16.mxu0 0
      %1279 = vmatpush1.bf16.msra.mxu0 0
      %1280 = vmatprep.subr.bf16.mxu0 0
      %1281 = vmatpush1.bf16.msra.mxu0 0
      %1282 = vmatprep.mubr.bf16.mxu0 0
      %1283 = vmatmul.mubr.bf16.gmra.mrb[0].mxu0 %v1218
      %v1284 = vpop.f32.mrb[0].mxu0
      %v1285 = vadd.f32 %v997, %v1284
      %v1286 = vpop.f32.mrb[0].mxu0
      %v1287 = vadd.f32 %v997, %v1286
      %v1288 = vpop.f32.mrb[0].mxu0
      %v1289 = vadd.f32 %v1002, %v1288
      %v1290 = vpop.f32.mrb[0].mxu0
      %v1291 = vadd.f32 %v1002, %v1290
      %1292 = vmatprep.mubr.bf16.mxu0 0
      %1293 = vmatmul.mubr.bf16.gmra.mrb[0].mxu0 %v1219
      %v1294 = vpop.f32.mrb[0].mxu0
      %v1295 = vadd.f32 %v1007, %v1294
      %v1296 = vpop.f32.mrb[0].mxu0
      %v1297 = vadd.f32 %v1007, %v1296
      %v1298 = vpop.f32.mrb[0].mxu0
      %v1299 = vadd.f32 %v1012, %v1298
      %v1300 = vpop.f32.mrb[0].mxu0
      %v1301 = vadd.f32 %v1012, %v1300
      %1302 = vmatprep.mubr.bf16.mxu0 0
      %1303 = vmatmul.mubr.bf16.gmra.mrb[0].mxu0 %v1220
      %v1304 = vpop.f32.mrb[0].mxu0
      %v1305 = vadd.f32 %v1017, %v1304
      %v1306 = vpop.f32.mrb[0].mxu0
      %v1307 = vadd.f32 %v1017, %v1306
      %v1308 = vpop.f32.mrb[0].mxu0
      %v1309 = vadd.f32 %v1022, %v1308
      %v1310 = vpop.f32.mrb[0].mxu0
      %v1311 = vadd.f32 %v1022, %v1310
      %1312 = vmatprep.mubr.bf16.mxu0 0
      %1313 = vmatmul.mubr.bf16.gmra.mrb[0].mxu0 %v1221
      %v1314 = vpop.f32.mrb[0].mxu0
      %v1315 = vadd.f32 %v1027, %v1314
      %v1316 = vpop.f32.mrb[0].mxu0
      %v1317 = vadd.f32 %v1027, %v1316
      %v1318 = vpop.f32.mrb[0].mxu0
      %v1319 = vadd.f32 %v1032, %v1318
      %v1320 = vpop.f32.mrb[0].mxu0
      %v1321 = vadd.f32 %v1032, %v1320
      %1322 = vmatprep.mubr.bf16.mxu0 0
      %1323 = vmatmul.mubr.bf16.gmra.mrb[0].mxu0 %v1222
      %v1324 = vpop.f32.mrb[0].mxu0
      %v1325 = vadd.f32 %v1037, %v1324
      %v1326 = vpop.f32.mrb[0].mxu0
      %v1327 = vadd.f32 %v1037, %v1326
      %v1328 = vpop.f32.mrb[0].mxu0
      %v1329 = vadd.f32 %v1042, %v1328
      %v1330 = vpop.f32.mrb[0].mxu0
      %v1331 = vadd.f32 %v1042, %v1330
      %1332 = vmatprep.mubr.bf16.mxu0 0
      %1333 = vmatmul.mubr.bf16.gmra.mrb[0].mxu0 %v1223
      %v1334 = vpop.f32.mrb[0].mxu0
      %v1335 = vadd.f32 %v1047, %v1334
      %v1336 = vpop.f32.mrb[0].mxu0
      %v1337 = vadd.f32 %v1047, %v1336
      %v1338 = vpop.f32.mrb[0].mxu0
      %v1339 = vadd.f32 %v1052, %v1338
      %v1340 = vpop.f32.mrb[0].mxu0
      %v1341 = vadd.f32 %v1052, %v1340
      %1342 = vmatprep.mubr.bf16.mxu0 0
      %1343 = vmatmul.mubr.bf16.gmra.mrb[0].mxu0 %v1224
      %v1344 = vpop.f32.mrb[0].mxu0
      %v1345 = vadd.f32 %v1057, %v1344
      %v1346 = vpop.f32.mrb[0].mxu0
      %v1347 = vadd.f32 %v1057, %v1346
      %v1348 = vpop.f32.mrb[0].mxu0
      %v1349 = vadd.f32 %v1062, %v1348
      %v1350 = vpop.f32.mrb[0].mxu0
      %v1351 = vadd.f32 %v1062, %v1350
      %1352 = vmatprep.mubr.bf16.mxu0 0
      %1353 = vmatmul.mubr.bf16.gmra.mrb[0].mxu0 %v1225
      %v1354 = vpop.f32.mrb[0].mxu0
      %v1355 = vadd.f32 %v1067, %v1354
      %v1356 = vpop.f32.mrb[0].mxu0
      %v1357 = vadd.f32 %v1067, %v1356
      %v1358 = vpop.f32.mrb[0].mxu0
      %v1359 = vadd.f32 %v1072, %v1358
      %v1360 = vpop.f32.mrb[0].mxu0
      %v1361 = vadd.f32 %v1072, %v1360
      %1362 = vmatprep.mubr.bf16.mxu0 0
      %1363 = vmatmul.mubr.bf16.gmra.mrb[0].mxu0 %v1226
      %v1364 = vpop.f32.mrb[0].mxu0
      %v1365 = vadd.f32 %v1077, %v1364
      %v1366 = vpop.f32.mrb[0].mxu0
      %v1367 = vadd.f32 %v1077, %v1366
      %v1368 = vpop.f32.mrb[0].mxu0
      %v1369 = vadd.f32 %v1082, %v1368
      %v1370 = vpop.f32.mrb[0].mxu0
      %v1371 = vadd.f32 %v1082, %v1370
      %1372 = vmatprep.mubr.bf16.mxu0 0
      %1373 = vmatmul.mubr.bf16.gmra.mrb[0].mxu0 %v1227
      %v1374 = vpop.f32.mrb[0].mxu0
      %v1375 = vadd.f32 %v1087, %v1374
      %v1376 = vpop.f32.mrb[0].mxu0
      %v1377 = vadd.f32 %v1087, %v1376
      %v1378 = vpop.f32.mrb[0].mxu0
      %v1379 = vadd.f32 %v1092, %v1378
      %v1380 = vpop.f32.mrb[0].mxu0
      %v1381 = vadd.f32 %v1092, %v1380
      %1382 = vmatprep.mubr.bf16.mxu0 0
      %1383 = vmatmul.mubr.bf16.gmra.mrb[0].mxu0 %v1228
      %v1384 = vpop.f32.mrb[0].mxu0
      %v1385 = vadd.f32 %v1097, %v1384
      %v1386 = vpop.f32.mrb[0].mxu0
      %v1387 = vadd.f32 %v1097, %v1386
      %v1388 = vpop.f32.mrb[0].mxu0
      %v1389 = vadd.f32 %v1102, %v1388
      %v1390 = vpop.f32.mrb[0].mxu0
      %v1391 = vadd.f32 %v1102, %v1390
      %1392 = vmatprep.mubr.bf16.mxu0 0
      %1393 = vmatmul.mubr.bf16.gmra.mrb[0].mxu0 %v1229
      %v1394 = vpop.f32.mrb[0].mxu0
      %v1395 = vadd.f32 %v1107, %v1394
      %v1396 = vpop.f32.mrb[0].mxu0
      %v1397 = vadd.f32 %v1107, %v1396
      %v1398 = vpop.f32.mrb[0].mxu0
      %v1399 = vadd.f32 %v1112, %v1398
      %v1400 = vpop.f32.mrb[0].mxu0
      %v1401 = vadd.f32 %v1112, %v1400
      %1402 = vmatprep.mubr.bf16.mxu0 0
      %1403 = vmatmul.mubr.bf16.gmra.mrb[0].mxu0 %v1230
      %v1404 = vpop.f32.mrb[0].mxu0
      %v1405 = vadd.f32 %v1117, %v1404
      %v1406 = vpop.f32.mrb[0].mxu0
      %v1407 = vadd.f32 %v1117, %v1406
      %v1408 = vpop.f32.mrb[0].mxu0
      %v1409 = vadd.f32 %v1122, %v1408
      %v1410 = vpop.f32.mrb[0].mxu0
      %v1411 = vadd.f32 %v1122, %v1410
      %1412 = vmatprep.mubr.bf16.mxu0 0
      %1413 = vmatmul.mubr.bf16.gmra.mrb[0].mxu0 %v1231
      %v1414 = vpop.f32.mrb[0].mxu0
      %v1415 = vadd.f32 %v1127, %v1414
      %v1416 = vpop.f32.mrb[0].mxu0
      %v1417 = vadd.f32 %v1127, %v1416
      %v1418 = vpop.f32.mrb[0].mxu0
      %v1419 = vadd.f32 %v1132, %v1418
      %v1420 = vpop.f32.mrb[0].mxu0
      %v1421 = vadd.f32 %v1132, %v1420
      %1422 = vmatprep.mubr.bf16.mxu0 0
      %1423 = vmatmul.mubr.bf16.gmra.mrb[0].mxu0 %v1232
      %v1424 = vpop.f32.mrb[0].mxu0
      %v1425 = vadd.f32 %v1137, %v1424
      %v1426 = vpop.f32.mrb[0].mxu0
      %v1427 = vadd.f32 %v1137, %v1426
      %v1428 = vpop.f32.mrb[0].mxu0
      %v1429 = vadd.f32 %v1142, %v1428
      %v1430 = vpop.f32.mrb[0].mxu0
      %v1431 = vadd.f32 %v1142, %v1430
      %1432 = vmatprep.mubr.bf16.mxu0 0
      %1433 = vmatmul.mubr.bf16.gmra.mrb[0].mxu0 %v1233
      %v1434 = vpop.f32.mrb[0].mxu0
      %v1435 = vadd.f32 %v1147, %v1434
      %v1436 = vpop.f32.mrb[0].mxu0
      %v1437 = vadd.f32 %v1147, %v1436
      %v1438 = vpop.f32.mrb[0].mxu0
      %v1439 = vadd.f32 %v1152, %v1438
      %v1440 = vpop.f32.mrb[0].mxu0
      %v1441 = vadd.f32 %v1152, %v1440
      %1442 = vdwg.mxu0
      %v1443 = vmul.f32 %v1285, 0.01
      %v1444 = vmul.f32 %v1287, 0.01
      %v1445 = vmul.f32 %v1289, 0.01
      %v1446 = vmul.f32 %v1291, 0.01
      %v1447 = vmul.f32 %v1295, 0.01
      %v1448 = vmul.f32 %v1297, 0.01
      %v1449 = vmul.f32 %v1299, 0.01
      %v1450 = vmul.f32 %v1301, 0.01
      %v1451 = vmul.f32 %v1305, 0.01
      %v1452 = vmul.f32 %v1307, 0.01
      %v1453 = vmul.f32 %v1309, 0.01
      %v1454 = vmul.f32 %v1311, 0.01
      %v1455 = vmul.f32 %v1315, 0.01
      %v1456 = vmul.f32 %v1317, 0.01
      %v1457 = vmul.f32 %v1319, 0.01
      %v1458 = vmul.f32 %v1321, 0.01
      %v1459 = vmul.f32 %v1325, 0.01
      %v1460 = vmul.f32 %v1327, 0.01
      %v1461 = vmul.f32 %v1329, 0.01
      %v1462 = vmul.f32 %v1331, 0.01
      %v1463 = vmul.f32 %v1335, 0.01
      %v1464 = vmul.f32 %v1337, 0.01
      %v1465 = vmul.f32 %v1339, 0.01
      %v1466 = vmul.f32 %v1341, 0.01
      %v1467 = vmul.f32 %v1345, 0.01
      %v1468 = vmul.f32 %v1347, 0.01
      %v1469 = vmul.f32 %v1349, 0.01
      %v1470 = vmul.f32 %v1351, 0.01
      %v1471 = vmul.f32 %v1355, 0.01
      %v1472 = vmul.f32 %v1357, 0.01
      %v1473 = vmul.f32 %v1359, 0.01
      %v1474 = vmul.f32 %v1361, 0.01
      %v1475 = vmul.f32 %v1365, 0.01
      %v1476 = vmul.f32 %v1367, 0.01
      %v1477 = vmul.f32 %v1369, 0.01
      %v1478 = vmul.f32 %v1371, 0.01
      %v1479 = vmul.f32 %v1375, 0.01
      %v1480 = vmul.f32 %v1377, 0.01
      %v1481 = vmul.f32 %v1379, 0.01
      %v1482 = vmul.f32 %v1381, 0.01
      %v1483 = vmul.f32 %v1385, 0.01
      %v1484 = vmul.f32 %v1387, 0.01
      %v1485 = vmul.f32 %v1389, 0.01
      %v1486 = vmul.f32 %v1391, 0.01
      %v1487 = vmul.f32 %v1395, 0.01
      %v1488 = vmul.f32 %v1397, 0.01
      %v1489 = vmul.f32 %v1399, 0.01
      %v1490 = vmul.f32 %v1401, 0.01
      %v1491 = vmul.f32 %v1405, 0.01
      %v1492 = vmul.f32 %v1407, 0.01
      %v1493 = vmul.f32 %v1409, 0.01
      %v1494 = vmul.f32 %v1411, 0.01
      %v1495 = vmul.f32 %v1415, 0.01
      %v1496 = vmul.f32 %v1417, 0.01
      %v1497 = vmul.f32 %v1419, 0.01
      %v1498 = vmul.f32 %v1421, 0.01
      %v1499 = vmul.f32 %v1425, 0.01
      %v1500 = vmul.f32 %v1427, 0.01
      %v1501 = vmul.f32 %v1429, 0.01
      %v1502 = vmul.f32 %v1431, 0.01
      %v1503 = vmul.f32 %v1435, 0.01
      %v1504 = vmul.f32 %v1437, 0.01
      %v1505 = vmul.f32 %v1439, 0.01
      %v1506 = vmul.f32 %v1441, 0.01
      %v1507 = vmax.f32 %v1285, %v1443
      %v1508 = vmax.f32 %v1287, %v1444
      %v1509 = vmax.f32 %v1289, %v1445
      %v1510 = vmax.f32 %v1291, %v1446
      %v1511 = vmax.f32 %v1295, %v1447
      %v1512 = vmax.f32 %v1297, %v1448
      %v1513 = vmax.f32 %v1299, %v1449
      %v1514 = vmax.f32 %v1301, %v1450
      %v1515 = vmax.f32 %v1305, %v1451
      %v1516 = vmax.f32 %v1307, %v1452
      %v1517 = vmax.f32 %v1309, %v1453
      %v1518 = vmax.f32 %v1311, %v1454
      %v1519 = vmax.f32 %v1315, %v1455
      %v1520 = vmax.f32 %v1317, %v1456
      %v1521 = vmax.f32 %v1319, %v1457
      %v1522 = vmax.f32 %v1321, %v1458
      %v1523 = vmax.f32 %v1325, %v1459
      %v1524 = vmax.f32 %v1327, %v1460
      %v1525 = vmax.f32 %v1329, %v1461
      %v1526 = vmax.f32 %v1331, %v1462
      %v1527 = vmax.f32 %v1335, %v1463
      %v1528 = vmax.f32 %v1337, %v1464
      %v1529 = vmax.f32 %v1339, %v1465
      %v1530 = vmax.f32 %v1341, %v1466
      %v1531 = vmax.f32 %v1345, %v1467
      %v1532 = vmax.f32 %v1347, %v1468
      %v1533 = vmax.f32 %v1349, %v1469
      %v1534 = vmax.f32 %v1351, %v1470
      %v1535 = vmax.f32 %v1355, %v1471
      %v1536 = vmax.f32 %v1357, %v1472
      %v1537 = vmax.f32 %v1359, %v1473
      %v1538 = vmax.f32 %v1361, %v1474
      %v1539 = vmax.f32 %v1365, %v1475
      %v1540 = vmax.f32 %v1367, %v1476
      %v1541 = vmax.f32 %v1369, %v1477
      %v1542 = vmax.f32 %v1371, %v1478
      %v1543 = vmax.f32 %v1375, %v1479
      %v1544 = vmax.f32 %v1377, %v1480
      %v1545 = vmax.f32 %v1379, %v1481
      %v1546 = vmax.f32 %v1381, %v1482
      %v1547 = vmax.f32 %v1385, %v1483
      %v1548 = vmax.f32 %v1387, %v1484
      %v1549 = vmax.f32 %v1389, %v1485
      %v1550 = vmax.f32 %v1391, %v1486
      %v1551 = vmax.f32 %v1395, %v1487
      %v1552 = vmax.f32 %v1397, %v1488
      %v1553 = vmax.f32 %v1399, %v1489
      %v1554 = vmax.f32 %v1401, %v1490
      %v1555 = vmax.f32 %v1405, %v1491
      %v1556 = vmax.f32 %v1407, %v1492
      %v1557 = vmax.f32 %v1409, %v1493
      %v1558 = vmax.f32 %v1411, %v1494
      %v1559 = vmax.f32 %v1415, %v1495
      %v1560 = vmax.f32 %v1417, %v1496
      %v1561 = vmax.f32 %v1419, %v1497
      %v1562 = vmax.f32 %v1421, %v1498
      %v1563 = vmax.f32 %v1425, %v1499
      %v1564 = vmax.f32 %v1427, %v1500
      %v1565 = vmax.f32 %v1429, %v1501
      %v1566 = vmax.f32 %v1431, %v1502
      %v1567 = vmax.f32 %v1435, %v1503
      %v1568 = vmax.f32 %v1437, %v1504
      %v1569 = vmax.f32 %v1439, %v1505
      %v1570 = vmax.f32 %v1441, %v1506
      %v1571 = vmax.f32 %v1507, %v1508
      %1572 = vmax.xlane.f32.xlu0 %v1571
      %v1573 = vpop.xlane.xlu0 %1572
      %v1574 = vmax.f32 %v1509, %v1510
      %1575 = vmax.xlane.f32.xlu0 %v1574
      %v1576 = vpop.xlane.xlu0 %1575
      %v1577 = vmax.f32 %v1511, %v1512
      %1578 = vmax.xlane.f32.xlu0 %v1577
      %v1579 = vpop.xlane.xlu0 %1578
      %v1580 = vmax.f32 %v1513, %v1514
      %1581 = vmax.xlane.f32.xlu0 %v1580
      %v1582 = vpop.xlane.xlu0 %1581
      %v1583 = vmax.f32 %v1515, %v1516
      %1584 = vmax.xlane.f32.xlu0 %v1583
      %v1585 = vpop.xlane.xlu0 %1584
      %v1586 = vmax.f32 %v1517, %v1518
      %1587 = vmax.xlane.f32.xlu0 %v1586
      %v1588 = vpop.xlane.xlu0 %1587
      %v1589 = vmax.f32 %v1519, %v1520
      %1590 = vmax.xlane.f32.xlu0 %v1589
      %v1591 = vpop.xlane.xlu0 %1590
      %v1592 = vmax.f32 %v1521, %v1522
      %1593 = vmax.xlane.f32.xlu0 %v1592
      %v1594 = vpop.xlane.xlu0 %1593
      %v1595 = vmax.f32 %v1523, %v1524
      %1596 = vmax.xlane.f32.xlu0 %v1595
      %v1597 = vpop.xlane.xlu0 %1596
      %v1598 = vmax.f32 %v1525, %v1526
      %1599 = vmax.xlane.f32.xlu0 %v1598
      %v1600 = vpop.xlane.xlu0 %1599
      %v1601 = vmax.f32 %v1527, %v1528
      %1602 = vmax.xlane.f32.xlu0 %v1601
      %v1603 = vpop.xlane.xlu0 %1602
      %v1604 = vmax.f32 %v1529, %v1530
      %1605 = vmax.xlane.f32.xlu0 %v1604
      %v1606 = vpop.xlane.xlu0 %1605
      %v1607 = vmax.f32 %v1531, %v1532
      %1608 = vmax.xlane.f32.xlu0 %v1607
      %v1609 = vpop.xlane.xlu0 %1608
      %v1610 = vmax.f32 %v1533, %v1534
      %1611 = vmax.xlane.f32.xlu0 %v1610
      %v1612 = vpop.xlane.xlu0 %1611
      %v1613 = vmax.f32 %v1535, %v1536
      %1614 = vmax.xlane.f32.xlu0 %v1613
      %v1615 = vpop.xlane.xlu0 %1614
      %v1616 = vmax.f32 %v1537, %v1538
      %1617 = vmax.xlane.f32.xlu0 %v1616
      %v1618 = vpop.xlane.xlu0 %1617
      %v1619 = vmax.f32 %v1539, %v1540
      %1620 = vmax.xlane.f32.xlu0 %v1619
      %v1621 = vpop.xlane.xlu0 %1620
      %v1622 = vmax.f32 %v1541, %v1542
      %1623 = vmax.xlane.f32.xlu0 %v1622
      %v1624 = vpop.xlane.xlu0 %1623
      %v1625 = vmax.f32 %v1543, %v1544
      %1626 = vmax.xlane.f32.xlu0 %v1625
      %v1627 = vpop.xlane.xlu0 %1626
      %v1628 = vmax.f32 %v1545, %v1546
      %1629 = vmax.xlane.f32.xlu0 %v1628
      %v1630 = vpop.xlane.xlu0 %1629
      %v1631 = vmax.f32 %v1547, %v1548
      %1632 = vmax.xlane.f32.xlu0 %v1631
      %v1633 = vpop.xlane.xlu0 %1632
      %v1634 = vmax.f32 %v1549, %v1550
      %1635 = vmax.xlane.f32.xlu0 %v1634
      %v1636 = vpop.xlane.xlu0 %1635
      %v1637 = vmax.f32 %v1551, %v1552
      %1638 = vmax.xlane.f32.xlu0 %v1637
      %v1639 = vpop.xlane.xlu0 %1638
      %v1640 = vmax.f32 %v1553, %v1554
      %1641 = vmax.xlane.f32.xlu0 %v1640
      %v1642 = vpop.xlane.xlu0 %1641
      %v1643 = vmax.f32 %v1555, %v1556
      %1644 = vmax.xlane.f32.xlu0 %v1643
      %v1645 = vpop.xlane.xlu0 %1644
      %v1646 = vmax.f32 %v1557, %v1558
      %1647 = vmax.xlane.f32.xlu0 %v1646
      %v1648 = vpop.xlane.xlu0 %1647
      %v1649 = vmax.f32 %v1559, %v1560
      %1650 = vmax.xlane.f32.xlu0 %v1649
      %v1651 = vpop.xlane.xlu0 %1650
      %v1652 = vmax.f32 %v1561, %v1562
      %1653 = vmax.xlane.f32.xlu0 %v1652
      %v1654 = vpop.xlane.xlu0 %1653
      %v1655 = vmax.f32 %v1563, %v1564
      %1656 = vmax.xlane.f32.xlu0 %v1655
      %v1657 = vpop.xlane.xlu0 %1656
      %v1658 = vmax.f32 %v1565, %v1566
      %1659 = vmax.xlane.f32.xlu0 %v1658
      %v1660 = vpop.xlane.xlu0 %1659
      %v1661 = vmax.f32 %v1567, %v1568
      %1662 = vmax.xlane.f32.xlu0 %v1661
      %v1663 = vpop.xlane.xlu0 %1662
      %v1664 = vmax.f32 %v1569, %v1570
      %1665 = vmax.xlane.f32.xlu0 %v1664
      %v1666 = vpop.xlane.xlu0 %1665
      %v1667 = vld [vmem:[%s306] sm:$0xff]
      %v1668 = vld [vmem:[%s306 + $0x8] sm:$0xff]
      %v1669 = vld [vmem:[%s306 + $0x10] sm:$0xff]
      %v1670 = vld [vmem:[%s306 + $0x18] sm:$0xff]
      %v1671 = vld [vmem:[%s306 + $0x20] sm:$0xff]
      %v1672 = vld [vmem:[%s306 + $0x28] sm:$0xff]
      %v1673 = vld [vmem:[%s306 + $0x30] sm:$0xff]
      %v1674 = vld [vmem:[%s306 + $0x38] sm:$0xff]
      %v1675 = vld [vmem:[%s306 + $0x40] sm:$0xff]
      %v1676 = vld [vmem:[%s306 + $0x48] sm:$0xff]
      %v1677 = vld [vmem:[%s306 + $0x50] sm:$0xff]
      %v1678 = vld [vmem:[%s306 + $0x58] sm:$0xff]
      %v1679 = vld [vmem:[%s306 + $0x60] sm:$0xff]
      %v1680 = vld [vmem:[%s306 + $0x68] sm:$0xff]
      %v1681 = vld [vmem:[%s306 + $0x70] sm:$0xff]
      %v1682 = vld [vmem:[%s306 + $0x78] sm:$0xff]
      %v1683 = vld [vmem:[%s306 + $0x80] sm:$0xff]
      %v1684 = vld [vmem:[%s306 + $0x88] sm:$0xff]
      %v1685 = vld [vmem:[%s306 + $0x90] sm:$0xff]
      %v1686 = vld [vmem:[%s306 + $0x98] sm:$0xff]
      %v1687 = vld [vmem:[%s306 + $0xa0] sm:$0xff]
      %v1688 = vld [vmem:[%s306 + $0xa8] sm:$0xff]
      %v1689 = vld [vmem:[%s306 + $0xb0] sm:$0xff]
      %v1690 = vld [vmem:[%s306 + $0xb8] sm:$0xff]
      %v1691 = vld [vmem:[%s306 + $0xc0] sm:$0xff]
      %v1692 = vld [vmem:[%s306 + $0xc8] sm:$0xff]
      %v1693 = vld [vmem:[%s306 + $0xd0] sm:$0xff]
      %v1694 = vld [vmem:[%s306 + $0xd8] sm:$0xff]
      %v1695 = vld [vmem:[%s306 + $0xe0] sm:$0xff]
      %v1696 = vld [vmem:[%s306 + $0xe8] sm:$0xff]
      %v1697 = vld [vmem:[%s306 + $0xf0] sm:$0xff]
      %v1698 = vld [vmem:[%s306 + $0xf8] sm:$0xff]
      %v1699 = vmax.f32 %v1667, %v1573
      %v1700 = vmax.f32 %v1668, %v1576
      %v1701 = vmax.f32 %v1669, %v1579
      %v1702 = vmax.f32 %v1670, %v1582
      %v1703 = vmax.f32 %v1671, %v1585
      %v1704 = vmax.f32 %v1672, %v1588
      %v1705 = vmax.f32 %v1673, %v1591
      %v1706 = vmax.f32 %v1674, %v1594
      %v1707 = vmax.f32 %v1675, %v1597
      %v1708 = vmax.f32 %v1676, %v1600
      %v1709 = vmax.f32 %v1677, %v1603
      %v1710 = vmax.f32 %v1678, %v1606
      %v1711 = vmax.f32 %v1679, %v1609
      %v1712 = vmax.f32 %v1680, %v1612
      %v1713 = vmax.f32 %v1681, %v1615
      %v1714 = vmax.f32 %v1682, %v1618
      %v1715 = vmax.f32 %v1683, %v1621
      %v1716 = vmax.f32 %v1684, %v1624
      %v1717 = vmax.f32 %v1685, %v1627
      %v1718 = vmax.f32 %v1686, %v1630
      %v1719 = vmax.f32 %v1687, %v1633
      %v1720 = vmax.f32 %v1688, %v1636
      %v1721 = vmax.f32 %v1689, %v1639
      %v1722 = vmax.f32 %v1690, %v1642
      %v1723 = vmax.f32 %v1691, %v1645
      %v1724 = vmax.f32 %v1692, %v1648
      %v1725 = vmax.f32 %v1693, %v1651
      %v1726 = vmax.f32 %v1694, %v1654
      %v1727 = vmax.f32 %v1695, %v1657
      %v1728 = vmax.f32 %v1696, %v1660
      %v1729 = vmax.f32 %v1697, %v1663
      %v1730 = vmax.f32 %v1698, %v1666
      %vm1731 = vcmask 7168
      %1732 = vst.msk [vmem:[%s306] sm:$0xff] %vm1731, %v1699
      %1733 = vst.msk [vmem:[%s306 + $0x8] sm:$0xff] %vm1731, %v1700
      %1734 = vst.msk [vmem:[%s306 + $0x10] sm:$0xff] %vm1731, %v1701
      %1735 = vst.msk [vmem:[%s306 + $0x18] sm:$0xff] %vm1731, %v1702
      %1736 = vst.msk [vmem:[%s306 + $0x20] sm:$0xff] %vm1731, %v1703
      %1737 = vst.msk [vmem:[%s306 + $0x28] sm:$0xff] %vm1731, %v1704
      %1738 = vst.msk [vmem:[%s306 + $0x30] sm:$0xff] %vm1731, %v1705
      %1739 = vst.msk [vmem:[%s306 + $0x38] sm:$0xff] %vm1731, %v1706
      %1740 = vst.msk [vmem:[%s306 + $0x40] sm:$0xff] %vm1731, %v1707
      %1741 = vst.msk [vmem:[%s306 + $0x48] sm:$0xff] %vm1731, %v1708
      %1742 = vst.msk [vmem:[%s306 + $0x50] sm:$0xff] %vm1731, %v1709
      %1743 = vst.msk [vmem:[%s306 + $0x58] sm:$0xff] %vm1731, %v1710
      %1744 = vst.msk [vmem:[%s306 + $0x60] sm:$0xff] %vm1731, %v1711
      %1745 = vst.msk [vmem:[%s306 + $0x68] sm:$0xff] %vm1731, %v1712
      %1746 = vst.msk [vmem:[%s306 + $0x70] sm:$0xff] %vm1731, %v1713
      %1747 = vst.msk [vmem:[%s306 + $0x78] sm:$0xff] %vm1731, %v1714
      %1748 = vst.msk [vmem:[%s306 + $0x80] sm:$0xff] %vm1731, %v1715
      %1749 = vst.msk [vmem:[%s306 + $0x88] sm:$0xff] %vm1731, %v1716
      %1750 = vst.msk [vmem:[%s306 + $0x90] sm:$0xff] %vm1731, %v1717
      %1751 = vst.msk [vmem:[%s306 + $0x98] sm:$0xff] %vm1731, %v1718
      %1752 = vst.msk [vmem:[%s306 + $0xa0] sm:$0xff] %vm1731, %v1719
      %1753 = vst.msk [vmem:[%s306 + $0xa8] sm:$0xff] %vm1731, %v1720
      %1754 = vst.msk [vmem:[%s306 + $0xb0] sm:$0xff] %vm1731, %v1721
      %1755 = vst.msk [vmem:[%s306 + $0xb8] sm:$0xff] %vm1731, %v1722
      %1756 = vst.msk [vmem:[%s306 + $0xc0] sm:$0xff] %vm1731, %v1723
      %1757 = vst.msk [vmem:[%s306 + $0xc8] sm:$0xff] %vm1731, %v1724
      %1758 = vst.msk [vmem:[%s306 + $0xd0] sm:$0xff] %vm1731, %v1725
      %1759 = vst.msk [vmem:[%s306 + $0xd8] sm:$0xff] %vm1731, %v1726
      %1760 = vst.msk [vmem:[%s306 + $0xe0] sm:$0xff] %vm1731, %v1727
      %1761 = vst.msk [vmem:[%s306 + $0xe8] sm:$0xff] %vm1731, %v1728
      %1762 = vst.msk [vmem:[%s306 + $0xf0] sm:$0xff] %vm1731, %v1729
      %1763 = vst.msk [vmem:[%s306 + $0xf8] sm:$0xff] %vm1731, %v1730
      %p1764 = scmp.lt.s32.totalorder %s22, 1
      %s1765 = scalar_select %p1764, %s22, 1
      %s1766 = smul.addr %s1765, 32
      %s1767 = smul.addr %s1766, 8
      %s1768 = scalar_lea.vmem %s7, %s1767
      // Predicated region
      $region53: #{pose_proxy_forward.1} parent=47 // pred_check
        %p1769 = pneg %p202
      $region54: #{pose_proxy_forward.1} parent=47 // pred_check_branch
        %1771 = sbr.rel (%p1769) target = $region56
      $region55: #{pose_proxy_forward.1} parent=47 // pred_region
        _
      $region56: #{pose_proxy_forward.1} parent=47 // pred_fallthru
        _
    $region48: #{pose_proxy_forward.1} parent=5 // pred_fallthru
      _
    %p1772 = scmp.le.s32.totalorder 2, %s13
    // Predicated region
    $region57: #{pose_proxy_forward.1} parent=5 // pred_check
      %p1773 = pneg %p1772
    $region58: #{pose_proxy_forward.1} parent=5 // pred_check_branch
      %1775 = sbr.rel (%p1773) target = $region60
    $region59: #{pose_proxy_forward.1} parent=5 // pred_region
      %s1776 = ssub.s32 %s13, 2
      // Predicated region
      $region61: #{pose_proxy_forward.1} parent=59 // pred_check
        %p1777 = pneg %p208
      $region62: #{pose_proxy_forward.1} parent=59 // pred_check_branch
        %1779 = sbr.rel (%p1777) target = $region64
      $region63: #{pose_proxy_forward.1} parent=59 // pred_region
        %p1780 = scmp.lt.s32.totalorder %s24, 1
        %s1781 = scalar_select %p1780, %s24, 1
        %s1782 = smul.addr %s1781, 32
        %s1783 = smul.addr %s1782, 8
        %s1784 = scalar_lea.vmem %s7, %s1783
      $region64: #{pose_proxy_forward.1} parent=59 // pred_fallthru
        _
    $region60: #{pose_proxy_forward.1} parent=5 // pred_fallthru
      _
  $region6: #{pose_proxy_forward.1} parent=0 // loop_footer
    %s17 = sadd.s32 1, %s13
  $region7: #{pose_proxy_forward.1} parent=0 // loop_footer_branch
    %12 = sbr.rel target = $region3
  $region8: #{pose_proxy_forward.1} parent=0 // loop_exit
    _

</llo_original>
